<compile_context>
chip_gen: v5e
topology: v5e:2x2
jax: 0.10.0
libtpu: 0.0.40
codegen_flags: <defaults>
</compile_context>

<pallas_src>
import jax
import jax.numpy as jnp
from jax import lax
from jax.experimental import pallas as pl
from jax.experimental.pallas import tpu as pltpu

EPS = 1e-5          # BatchNorm eps
DILATION = 4
PAD = 4             # padding == dilation in the reference module
NTAP = 9            # 3x3 kernel taps


def _round_up(v, m):
    return (v + m - 1) // m * m


def _vmem_capacity_bytes():
    try:
        return int(pltpu.get_tpu_info().vmem_capacity_bytes)
    except Exception:
        return 64 << 20            # smallest of current generations (v7x)


# ----------------------------------------------------------------------------
# Pallas kernel
# ----------------------------------------------------------------------------
def make_bam_kernel(H, W, MIDP, Bt):
    HW = H * W
    D = DILATION
    inv_hw = 1.0 / float(HW)

    def kernel(x_ref, wcat_ref, b1_ref, br_ref, w2_ref, b2_ref,
               wd_ref, bd_ref, wf_ref, bf_ref, mask_ref, o_ref, t_ref):
        # Hoist the (tiny) weight loads out of the per-image loop.
        wcat = wcat_ref[...]                             # (2*MIDP, C)
        b1 = b1_ref[...]                                 # (MIDP, 1)
        br = br_ref[...]                                 # (MIDP, 1)
        w2 = w2_ref[...]                                 # (C, MIDP)
        b2 = b2_ref[...]                                 # (C, 1)
        wd0, wd1 = wd_ref[0], wd_ref[1]                  # (MIDP, 9*MIDP)
        bd0, bd1 = bd_ref[0], bd_ref[1]                  # (MIDP, 1)
        wf = wf_ref[...]                                 # (MIDP, 1)
        bf = bf_ref[...]                                 # (1, 1)

        for img in range(Bt):                            # static unroll
            x2d = x_ref[img].astype(jnp.float32)         # (C, HW) lane-dense

            # ---- fused first matmul (channel-attn W1 + reduce_conv share x)
            fused = jnp.dot(wcat, x2d, preferred_element_type=jnp.float32)
            # channel attention: hid = relu(W1 @ mean_hw(x) + b1), computed as
            # mean_hw(W1 @ x) so the matmul stays lane-dense (N = HW).
            hid = jnp.maximum(
                jnp.sum(fused[:MIDP], axis=-1, keepdims=True) * inv_hw + b1,
                0.0)                                     # (MIDP, 1)
            # spatial attention: 1x1 reduce_conv (+folded BN) + ReLU
            y = jnp.maximum(fused[MIDP:] + br, 0.0)      # (MIDP, HW)

            # ---- two dilated 3x3 convs (+ folded BN) + ReLU.
            # im2col: 9 masked lane rolls of the flat (MIDP, HW) activation
            # stored into an 8-sublane-aligned VMEM scratch (MID padded to 8,
            # so every tap store is a full aligned tile), then one MXU matmul.
            # Correctness of flat-roll + mask: every wrapped lane position is
            # exactly an out-of-image (masked) tap.
            for wdl, bdl in ((wd0, bd0), (wd1, bd1)):
                for tap in range(NTAP):
                    ky, kx = tap // 3, tap % 3
                    s = ((ky - 1) * W + (kx - 1)) * D    # flat source offset
                    if s == 0:
                        t_val = y                        # centre tap: always valid
                    else:
                        rolled = pltpu.roll(y, shift=(-s) % HW, axis=1)
                        t_val = rolled * mask_ref[tap:tap + 1, :]   # (1,HW) mask row
                    t_ref[pl.ds(tap * MIDP, MIDP), :] = t_val
                y = jnp.maximum(
                    jnp.dot(wdl, t_ref[...],
                            preferred_element_type=jnp.float32) + bdl,
                    0.0)                                 # (MIDP, HW)

            # ---- final 1x1 conv MIDP -> 1 (+ folded BN): weighted sublane sum
            sa = jnp.sum(wf * y, axis=0, keepdims=True) + bf        # (1, HW)

            # ---- combine: ca = W2 @ hid + b2; att = 1 + sigmoid(ca * sa)
            # fused as W2 @ (hid*sa) + b2*sa so the matmul keeps N = HW.
            casa = (jnp.dot(w2, hid * sa, preferred_element_type=jnp.float32)
                    + b2 * sa)                           # (C, HW)
            # sigmoid routed through the EUP (exp + reciprocal, full precision)
            att = 1.0 + pl.reciprocal(1.0 + jnp.exp(-casa), approx=False)
            o_ref[img] = (att * x2d).astype(o_ref.dtype)  # lane-dense full store

    return kernel


def _pick_block_batch(B, C, HW, itemsize):
    """Images per grid step: amortize per-step overhead, stay well inside
    VMEM (v7x: 64 MiB physical / 32 MiB default scoped), keep >= 2 grid steps
    so v7x's two TensorCores both get work, and keep the grid exact."""
    vmem_cap = _vmem_capacity_bytes()
    per_img = C * HW * itemsize
    # 2 (double-buffer) x 2 (in + out) blocks must fit in ~1/4 of VMEM.
    bt_cap = max(1, (vmem_cap // 4) // (4 * per_img))
    bt_cap = min(bt_cap, 16)                   # bound unroll / trace size
    bt = max(1, min(bt_cap, B // 2 if B >= 2 else 1))
    while B % bt:                              # keep the grid exact
        bt -= 1
    return bt


def bam_pallas(x, p, block_batch=None):
    B, C, H, W = x.shape
    MIDP = p["wcat"].shape[0] // 2
    HW = H * W
    Bt = (block_batch if block_batch is not None
          else _pick_block_batch(B, C, HW, x.dtype.itemsize))
    assert B % Bt == 0, (B, Bt)
    nb = B // Bt

    kernel = make_bam_kernel(H, W, MIDP, Bt)

    vmem = pl.BlockSpec(memory_space=pltpu.MemorySpace.VMEM)
    xspec = pl.BlockSpec((Bt, C, HW), lambda b: (b, 0, 0))
    ospec = pl.BlockSpec((Bt, C, HW), lambda b: (b, 0, 0))

    # Raise the scoped-VMEM limit only if the double-buffered in+out blocks
    # plus weights/scratch could exceed the smallest per-generation default.
    vmem_cap = _vmem_capacity_bytes()
    block_bytes = 4 * Bt * C * HW * x.dtype.itemsize
    fixed_bytes = sum(int(v.size) * int(v.dtype.itemsize) for v in p.values())
    fixed_bytes += NTAP * MIDP * HW * 4
    vmem_needed = block_bytes + 2 * fixed_bytes + (1 << 20)
    cp_kwargs = dict(dimension_semantics=("parallel",))
    if vmem_needed > (16 << 20):
        cp_kwargs["vmem_limit_bytes"] = int(min(vmem_needed, vmem_cap))

    out = pl.pallas_call(
        kernel,
        out_shape=jax.ShapeDtypeStruct((B, C, HW), x.dtype),
        grid_spec=pltpu.PrefetchScalarGridSpec(
            num_scalar_prefetch=0,
            grid=(nb,),
            in_specs=[xspec] + [vmem] * 10,
            out_specs=ospec,
            scratch_shapes=[pltpu.VMEM((NTAP * MIDP, HW), jnp.float32)],
        ),
        compiler_params=pltpu.CompilerParams(**cp_kwargs),
    )(x.reshape(B, C, HW),
      p["wcat"], p["b1"], p["br"], p["w2"], p["b2"],
      p["wd"], p["bd"], p["wf"], p["bf"], p["masks"])
    return out.reshape(B, C, H, W)


# ----------------------------------------------------------------------------
# Deterministic parameter init (synthetic), BN folding, pure-JAX reference
# ----------------------------------------------------------------------------
def _bn_params(key, ch):
    k1, k2, k3, k4 = jax.random.split(key, 4)
    gamma = 1.0 + 0.1 * jax.random.normal(k1, (ch,), jnp.float32)
    beta = 0.1 * jax.random.normal(k2, (ch,), jnp.float32)
    rm = 0.1 * jax.random.normal(k3, (ch,), jnp.float32)
    rv = 1.0 + 0.1 * jnp.abs(jax.random.normal(k4, (ch,), jnp.float32))
    return gamma, beta, rm, rv


def init_params(key, C, reduction=16):
    MID = C // reduction
    ks = jax.random.split(key, 16)

    def n(k, shape, s=0.1):
        return s * jax.random.normal(k, shape, jnp.float32)

    p = {}
    # ChannelAttention MLP
    p["w1"] = n(ks[0], (MID, C));  p["b1"] = n(ks[1], (MID,))
    p["w2"] = n(ks[2], (C, MID));  p["b2"] = n(ks[3], (C,))
    # SpatialAttention: reduce_conv (1x1) + BN
    p["wr"] = n(ks[4], (MID, C, 1, 1));  p["br"] = n(ks[5], (MID,))
    p["bn_r"] = _bn_params(ks[6], MID)
    # two dilated 3x3 convs + BN
    p["wd0"] = n(ks[7], (MID, MID, 3, 3));  p["bd0"] = n(ks[8], (MID,))
    p["bn_d0"] = _bn_params(ks[9], MID)
    p["wd1"] = n(ks[10], (MID, MID, 3, 3));  p["bd1"] = n(ks[11], (MID,))
    p["bn_d1"] = _bn_params(ks[12], MID)
    # final 1x1 conv + BN
    p["wf"] = n(ks[13], (1, MID, 1, 1));  p["bf"] = n(ks[14], (1,))
    p["bn_f"] = _bn_params(ks[15], 1)
    return p


def _fold_bn(w, b, bn):
    gamma, beta, rm, rv = bn
    s = gamma / jnp.sqrt(rv + EPS)
    return w * s.reshape(-1, 1, 1, 1), (b - rm) * s + beta


def prepare_kernel_params(p, H, W):
    MID, C = p["w1"].shape
    MIDP = _round_up(MID, 8)                 # pad bottleneck channels to the
    HW = H * W                               # f32 sublane tile (8)

    wr_f, br_f = _fold_bn(p["wr"], p["br"], p["bn_r"])
    wd0_f, bd0_f = _fold_bn(p["wd0"], p["bd0"], p["bn_d0"])
    wd1_f, bd1_f = _fold_bn(p["wd1"], p["bd1"], p["bn_d1"])
    wf_f, bf_f = _fold_bn(p["wf"], p["bf"], p["bn_f"])

    def pad_rows(a, rows):
        out = jnp.zeros((rows,) + a.shape[1:], jnp.float32)
        return out.at[:a.shape[0]].set(a)

    # Channel-attention W1 and reduce_conv share the RHS x -> one stacked
    # (2*MIDP, C) weight for a single fused MXU matmul.
    wcat = jnp.concatenate(
        [pad_rows(p["w1"], MIDP), pad_rows(wr_f.reshape(MID, C), MIDP)],
        axis=0)

    def tapize(w):
        # (MID_out, MID_in, 3, 3) -> (MIDP, 9*MIDP): tap-major columns, each
        # tap group padded to the 8-sublane stride of the im2col scratch.
        wt = jnp.zeros((MIDP, NTAP, MIDP), jnp.float32)
        wt = wt.at[:MID, :, :MID].set(
            jnp.transpose(w, (0, 2, 3, 1)).reshape(MID, NTAP, MID))
        return wt.reshape(MIDP, NTAP * MIDP)

    # Per-tap validity masks (zero-padding emulation), one (HW,) row per tap.
    ii = jnp.arange(H).reshape(H, 1)
    jj = jnp.arange(W).reshape(1, W)
    mask_rows = []
    for ky in range(3):
        for kx in range(3):
            dy = (ky - 1) * DILATION
            dx = (kx - 1) * DILATION
            ok = ((ii + dy >= 0) & (ii + dy < H) &
                  (jj + dx >= 0) & (jj + dx < W))
            mask_rows.append(ok.astype(jnp.float32).reshape(HW))
    masks = jnp.stack(mask_rows, axis=0)                 # (9, HW)

    w2_p = jnp.zeros((C, MIDP), jnp.float32).at[:, :MID].set(p["w2"])

    return {
        "wcat": wcat,                                            # (2*MIDP, C)
        "b1": pad_rows(p["b1"].reshape(MID, 1), MIDP),           # (MIDP, 1)
        "br": pad_rows(br_f.reshape(MID, 1), MIDP),              # (MIDP, 1)
        "w2": w2_p,                                              # (C, MIDP)
        "b2": p["b2"].reshape(C, 1),                             # (C, 1)
        "wd": jnp.stack([tapize(wd0_f), tapize(wd1_f)], axis=0), # (2, MIDP, 9*MIDP)
        "bd": jnp.stack([pad_rows(bd0_f.reshape(MID, 1), MIDP),
                         pad_rows(bd1_f.reshape(MID, 1), MIDP)], axis=0),
        "wf": pad_rows(wf_f.reshape(MID, 1), MIDP),              # (MIDP, 1)
        "bf": bf_f.reshape(1, 1),                                # (1, 1)
        "masks": masks,                                          # (9, HW)
    }


def bam_reference(x, p):
    B, C, H, W = x.shape

    def conv(a, w, b, dilation=1, padding=0):
        out = lax.conv_general_dilated(
            a, w, window_strides=(1, 1),
            padding=[(padding, padding), (padding, padding)],
            rhs_dilation=(dilation, dilation),
            dimension_numbers=("NCHW", "OIHW", "NCHW"))
        return out + b.reshape(1, -1, 1, 1)

    def bn(a, params):
        g, bta, rm, rv = params
        sh = (1, -1, 1, 1)
        return (g.reshape(sh) * (a - rm.reshape(sh))
                / jnp.sqrt(rv.reshape(sh) + EPS) + bta.reshape(sh))

    # channel attention
    avg = jnp.mean(x, axis=(2, 3))
    h = jax.nn.relu(avg @ p["w1"].T + p["b1"])
    ca = (h @ p["w2"].T + p["b2"]).reshape(B, C, 1, 1)
    # spatial attention
    y = jax.nn.relu(bn(conv(x, p["wr"], p["br"]), p["bn_r"]))
    y = jax.nn.relu(bn(conv(y, p["wd0"], p["bd0"], DILATION, PAD), p["bn_d0"]))
    y = jax.nn.relu(bn(conv(y, p["wd1"], p["bd1"], DILATION, PAD), p["bn_d1"]))
    sa = bn(conv(y, p["wf"], p["bf"]), p["bn_f"])
    att = 1.0 + jax.nn.sigmoid(ca * sa)
    return att * x


# ----------------------------------------------------------------------------
if __name__ == "__main__":
    B, C, H, W = 2, 32, 16, 16   # channel=32, reduction=16 -> mid_channel=2
    key = jax.random.PRNGKey(0)
    kx, kp = jax.random.split(key)
    x = jax.random.normal(kx, (B, C, H, W), jnp.float32)

    raw_params = init_params(kp, C)
    kparams = prepare_kernel_params(raw_params, H, W)

    # f32 I/O: bit-for-bit comparable to the reference module.
    out = jax.block_until_ready(bam_pallas(x, kparams))
    ref = bam_reference(x, raw_params)
    assert out.shape == x.shape and out.dtype == x.dtype
    assert jnp.allclose(out, ref, atol=1e-4, rtol=1e-4), \
        float(jnp.max(jnp.abs(out - ref)))

    # bf16 HBM-I/O path (halves memory traffic on v6e/v7x); internal math f32.
    x16 = x.astype(jnp.bfloat16)
    out16 = jax.block_until_ready(bam_pallas(x16, kparams))
    assert out16.shape == x.shape and out16.dtype == jnp.bfloat16
    assert jnp.allclose(out16.astype(jnp.float32), ref, atol=1e-1, rtol=1e-1), \
        float(jnp.max(jnp.abs(out16.astype(jnp.float32) - ref)))

    print("KERNEL_OK")
</pallas_src>

<mosaic_0001>
module attributes {stable_mosaic.version = 11 : i64} {
  func.func @kernel(%arg0: i32, %arg1: memref<1x32x256xf32, #tpu.memory_space<vmem>>, %arg2: memref<16x32xf32, #tpu.memory_space<vmem>>, %arg3: memref<8x1xf32, #tpu.memory_space<vmem>>, %arg4: memref<8x1xf32, #tpu.memory_space<vmem>>, %arg5: memref<32x8xf32, #tpu.memory_space<vmem>>, %arg6: memref<32x1xf32, #tpu.memory_space<vmem>>, %arg7: memref<2x8x72xf32, #tpu.memory_space<vmem>>, %arg8: memref<2x8x1xf32, #tpu.memory_space<vmem>>, %arg9: memref<8x1xf32, #tpu.memory_space<vmem>>, %arg10: memref<1x1xf32, #tpu.memory_space<vmem>>, %arg11: memref<9x256xf32, #tpu.memory_space<vmem>>, %arg12: memref<1x32x256xf32, #tpu.memory_space<vmem>>, %arg13: memref<72x256xf32, #tpu.memory_space<vmem>>) attributes {dimension_semantics = [#tpu.dimension_semantics<parallel>], iteration_bounds = array<i64: 2>, scalar_prefetch = 0 : i64, scratch_operands = 1 : i64, tpu.core_type = #tpu.core_type<tc>, window_params = [{transform_indices = @transform_0, window_bounds = array<i64: 1, 32, 256>}, {pipeline_mode = #tpu.pipeline_mode<synchronous>, transform_indices = @transform_1, window_bounds = array<i64: 16, 32>}, {pipeline_mode = #tpu.pipeline_mode<synchronous>, transform_indices = @transform_2, window_bounds = array<i64: 8, 1>}, {pipeline_mode = #tpu.pipeline_mode<synchronous>, transform_indices = @transform_3, window_bounds = array<i64: 8, 1>}, {pipeline_mode = #tpu.pipeline_mode<synchronous>, transform_indices = @transform_4, window_bounds = array<i64: 32, 8>}, {pipeline_mode = #tpu.pipeline_mode<synchronous>, transform_indices = @transform_5, window_bounds = array<i64: 32, 1>}, {pipeline_mode = #tpu.pipeline_mode<synchronous>, transform_indices = @transform_6, window_bounds = array<i64: 2, 8, 72>}, {pipeline_mode = #tpu.pipeline_mode<synchronous>, transform_indices = @transform_7, window_bounds = array<i64: 2, 8, 1>}, {pipeline_mode = #tpu.pipeline_mode<synchronous>, transform_indices = @transform_8, window_bounds = array<i64: 8, 1>}, {pipeline_mode = #tpu.pipeline_mode<synchronous>, transform_indices = @transform_9, window_bounds = array<i64: 1, 1>}, {pipeline_mode = #tpu.pipeline_mode<synchronous>, transform_indices = @transform_10, window_bounds = array<i64: 9, 256>}, {transform_indices = @transform_11, window_bounds = array<i64: 1, 32, 256>}]} {
    %c0 = arith.constant 0 : index
    %c0_0 = arith.constant 0 : index
    %0 = vector.load %arg2[%c0, %c0_0] : memref<16x32xf32, #tpu.memory_space<vmem>>, vector<16x32xf32>
    %c0_1 = arith.constant 0 : index
    %c0_2 = arith.constant 0 : index
    %1 = vector.load %arg3[%c0_1, %c0_2] : memref<8x1xf32, #tpu.memory_space<vmem>>, vector<8x1xf32>
    %c0_3 = arith.constant 0 : index
    %c0_4 = arith.constant 0 : index
    %2 = vector.load %arg4[%c0_3, %c0_4] : memref<8x1xf32, #tpu.memory_space<vmem>>, vector<8x1xf32>
    %c0_5 = arith.constant 0 : index
    %c0_6 = arith.constant 0 : index
    %3 = vector.load %arg5[%c0_5, %c0_6] : memref<32x8xf32, #tpu.memory_space<vmem>>, vector<32x8xf32>
    %c0_7 = arith.constant 0 : index
    %c0_8 = arith.constant 0 : index
    %4 = vector.load %arg6[%c0_7, %c0_8] : memref<32x1xf32, #tpu.memory_space<vmem>>, vector<32x1xf32>
    %c0_9 = arith.constant 0 : index
    %c0_10 = arith.constant 0 : index
    %c0_11 = arith.constant 0 : index
    %5 = vector.load %arg7[%c0_9, %c0_10, %c0_11] : memref<2x8x72xf32, #tpu.memory_space<vmem>>, vector<1x8x72xf32>
    %6 = vector.shape_cast %5 : vector<1x8x72xf32> to vector<8x72xf32>
    %c1 = arith.constant 1 : index
    %c0_12 = arith.constant 0 : index
    %c0_13 = arith.constant 0 : index
    %7 = vector.load %arg7[%c1, %c0_12, %c0_13] : memref<2x8x72xf32, #tpu.memory_space<vmem>>, vector<1x8x72xf32>
    %8 = vector.shape_cast %7 : vector<1x8x72xf32> to vector<8x72xf32>
    %c0_14 = arith.constant 0 : index
    %c0_15 = arith.constant 0 : index
    %c0_16 = arith.constant 0 : index
    %9 = vector.load %arg8[%c0_14, %c0_15, %c0_16] : memref<2x8x1xf32, #tpu.memory_space<vmem>>, vector<1x8x1xf32>
    %10 = vector.shape_cast %9 : vector<1x8x1xf32> to vector<8x1xf32>
    %c1_17 = arith.constant 1 : index
    %c0_18 = arith.constant 0 : index
    %c0_19 = arith.constant 0 : index
    %11 = vector.load %arg8[%c1_17, %c0_18, %c0_19] : memref<2x8x1xf32, #tpu.memory_space<vmem>>, vector<1x8x1xf32>
    %12 = vector.shape_cast %11 : vector<1x8x1xf32> to vector<8x1xf32>
    %c0_20 = arith.constant 0 : index
    %c0_21 = arith.constant 0 : index
    %13 = vector.load %arg9[%c0_20, %c0_21] : memref<8x1xf32, #tpu.memory_space<vmem>>, vector<8x1xf32>
    %c0_22 = arith.constant 0 : index
    %c0_23 = arith.constant 0 : index
    %14 = vector.load %arg10[%c0_22, %c0_23] : memref<1x1xf32, #tpu.memory_space<vmem>>, vector<1x1xf32>
    %c0_24 = arith.constant 0 : index
    %c0_25 = arith.constant 0 : index
    %c0_26 = arith.constant 0 : index
    %15 = vector.load %arg1[%c0_24, %c0_25, %c0_26] : memref<1x32x256xf32, #tpu.memory_space<vmem>>, vector<1x32x256xf32>
    %16 = vector.shape_cast %15 : vector<1x32x256xf32> to vector<32x256xf32>
    %cst = arith.constant dense<0.000000e+00> : vector<16x256xf32>
    %17 = tpu.matmul %0, %16, %cst {dimension_numbers = #tpu.dot_dimension_numbers<[1], [0], [0], [1], [0, 0, 1, 1], [], []>} : vector<16x32xf32>, vector<32x256xf32>, vector<16x256xf32> -> vector<16x256xf32>
    %18 = vector.extract_strided_slice %17 {offsets = [0, 0], sizes = [8, 256], strides = [1, 1]} : vector<16x256xf32> to vector<8x256xf32>
    %cst_27 = arith.constant dense<0.000000e+00> : vector<8xf32>
    %19 = vector.multi_reduction <add>, %18, %cst_27 [1] : vector<8x256xf32> to vector<8xf32>
    %20 = vector.shape_cast %19 : vector<8xf32> to vector<8x1xf32>
    %cst_28 = arith.constant 3.906250e-03 : f32
    %21 = vector.broadcast %cst_28 : f32 to vector<8x1xf32>
    %22 = arith.mulf %20, %21 : vector<8x1xf32>
    %23 = arith.addf %22, %1 : vector<8x1xf32>
    %cst_29 = arith.constant 0.000000e+00 : f32
    %24 = vector.broadcast %cst_29 : f32 to vector<8x1xf32>
    %25 = arith.maximumf %23, %24 : vector<8x1xf32>
    %26 = vector.extract_strided_slice %17 {offsets = [8, 0], sizes = [8, 256], strides = [1, 1]} : vector<16x256xf32> to vector<8x256xf32>
    %27 = vector.broadcast %2 : vector<8x1xf32> to vector<8x256xf32>
    %28 = arith.addf %26, %27 : vector<8x256xf32>
    %cst_30 = arith.constant 0.000000e+00 : f32
    %29 = vector.broadcast %cst_30 : f32 to vector<8x256xf32>
    %30 = arith.maximumf %28, %29 : vector<8x256xf32>
    %c68_i32 = arith.constant 68 : i32
    %31 = tpu.dynamic_rotate %30 by %c68_i32 dim 1 : vector<8x256xf32>, i32 -> vector<8x256xf32>
    %c0_31 = arith.constant 0 : index
    %c0_32 = arith.constant 0 : index
    %32 = vector.load %arg11[%c0_31, %c0_32] : memref<9x256xf32, #tpu.memory_space<vmem>>, vector<1x256xf32>
    %33 = vector.broadcast %32 : vector<1x256xf32> to vector<8x256xf32>
    %34 = arith.mulf %31, %33 : vector<8x256xf32>
    %c0_33 = arith.constant 0 : index
    %c0_34 = arith.constant 0 : index
    %35 = vector.load %arg13[%c0_33, %c0_34] : memref<72x256xf32, #tpu.memory_space<vmem>>, vector<8x256xf32>
    tpu.vector_store %arg13[%c0_33, %c0_34], %34 {strides = array<i32>} : memref<72x256xf32, #tpu.memory_space<vmem>>, vector<8x256xf32>,
    %c64_i32 = arith.constant 64 : i32
    %36 = tpu.dynamic_rotate %30 by %c64_i32 dim 1 : vector<8x256xf32>, i32 -> vector<8x256xf32>
    %c1_35 = arith.constant 1 : index
    %c0_36 = arith.constant 0 : index
    %37 = vector.load %arg11[%c1_35, %c0_36] : memref<9x256xf32, #tpu.memory_space<vmem>>, vector<1x256xf32>
    %38 = vector.broadcast %37 : vector<1x256xf32> to vector<8x256xf32>
    %39 = arith.mulf %36, %38 : vector<8x256xf32>
    %c8 = arith.constant 8 : index
    %c0_37 = arith.constant 0 : index
    %40 = vector.load %arg13[%c8, %c0_37] : memref<72x256xf32, #tpu.memory_space<vmem>>, vector<8x256xf32>
    tpu.vector_store %arg13[%c8, %c0_37], %39 {strides = array<i32>} : memref<72x256xf32, #tpu.memory_space<vmem>>, vector<8x256xf32>,
    %c60_i32 = arith.constant 60 : i32
    %41 = tpu.dynamic_rotate %30 by %c60_i32 dim 1 : vector<8x256xf32>, i32 -> vector<8x256xf32>
    %c2 = arith.constant 2 : index
    %c0_38 = arith.constant 0 : index
    %42 = vector.load %arg11[%c2, %c0_38] : memref<9x256xf32, #tpu.memory_space<vmem>>, vector<1x256xf32>
    %43 = vector.broadcast %42 : vector<1x256xf32> to vector<8x256xf32>
    %44 = arith.mulf %41, %43 : vector<8x256xf32>
    %c16 = arith.constant 16 : index
    %c0_39 = arith.constant 0 : index
    %45 = vector.load %arg13[%c16, %c0_39] : memref<72x256xf32, #tpu.memory_space<vmem>>, vector<8x256xf32>
    tpu.vector_store %arg13[%c16, %c0_39], %44 {strides = array<i32>} : memref<72x256xf32, #tpu.memory_space<vmem>>, vector<8x256xf32>,
    %c4_i32 = arith.constant 4 : i32
    %46 = tpu.dynamic_rotate %30 by %c4_i32 dim 1 : vector<8x256xf32>, i32 -> vector<8x256xf32>
    %c3 = arith.constant 3 : index
    %c0_40 = arith.constant 0 : index
    %47 = vector.load %arg11[%c3, %c0_40] : memref<9x256xf32, #tpu.memory_space<vmem>>, vector<1x256xf32>
    %48 = vector.broadcast %47 : vector<1x256xf32> to vector<8x256xf32>
    %49 = arith.mulf %46, %48 : vector<8x256xf32>
    %c24 = arith.constant 24 : index
    %c0_41 = arith.constant 0 : index
    %50 = vector.load %arg13[%c24, %c0_41] : memref<72x256xf32, #tpu.memory_space<vmem>>, vector<8x256xf32>
    tpu.vector_store %arg13[%c24, %c0_41], %49 {strides = array<i32>} : memref<72x256xf32, #tpu.memory_space<vmem>>, vector<8x256xf32>,
    %c32 = arith.constant 32 : index
    %c0_42 = arith.constant 0 : index
    %51 = vector.load %arg13[%c32, %c0_42] : memref<72x256xf32, #tpu.memory_space<vmem>>, vector<8x256xf32>
    tpu.vector_store %arg13[%c32, %c0_42], %30 {strides = array<i32>} : memref<72x256xf32, #tpu.memory_space<vmem>>, vector<8x256xf32>,
    %c252_i32 = arith.constant 252 : i32
    %52 = tpu.dynamic_rotate %30 by %c252_i32 dim 1 : vector<8x256xf32>, i32 -> vector<8x256xf32>
    %c5 = arith.constant 5 : index
    %c0_43 = arith.constant 0 : index
    %53 = vector.load %arg11[%c5, %c0_43] : memref<9x256xf32, #tpu.memory_space<vmem>>, vector<1x256xf32>
    %54 = vector.broadcast %53 : vector<1x256xf32> to vector<8x256xf32>
    %55 = arith.mulf %52, %54 : vector<8x256xf32>
    %c40 = arith.constant 40 : index
    %c0_44 = arith.constant 0 : index
    %56 = vector.load %arg13[%c40, %c0_44] : memref<72x256xf32, #tpu.memory_space<vmem>>, vector<8x256xf32>
    tpu.vector_store %arg13[%c40, %c0_44], %55 {strides = array<i32>} : memref<72x256xf32, #tpu.memory_space<vmem>>, vector<8x256xf32>,
    %c196_i32 = arith.constant 196 : i32
    %57 = tpu.dynamic_rotate %30 by %c196_i32 dim 1 : vector<8x256xf32>, i32 -> vector<8x256xf32>
    %c6 = arith.constant 6 : index
    %c0_45 = arith.constant 0 : index
    %58 = vector.load %arg11[%c6, %c0_45] : memref<9x256xf32, #tpu.memory_space<vmem>>, vector<1x256xf32>
    %59 = vector.broadcast %58 : vector<1x256xf32> to vector<8x256xf32>
    %60 = arith.mulf %57, %59 : vector<8x256xf32>
    %c48 = arith.constant 48 : index
    %c0_46 = arith.constant 0 : index
    %61 = vector.load %arg13[%c48, %c0_46] : memref<72x256xf32, #tpu.memory_space<vmem>>, vector<8x256xf32>
    tpu.vector_store %arg13[%c48, %c0_46], %60 {strides = array<i32>} : memref<72x256xf32, #tpu.memory_space<vmem>>, vector<8x256xf32>,
    %c192_i32 = arith.constant 192 : i32
    %62 = tpu.dynamic_rotate %30 by %c192_i32 dim 1 : vector<8x256xf32>, i32 -> vector<8x256xf32>
    %c7 = arith.constant 7 : index
    %c0_47 = arith.constant 0 : index
    %63 = vector.load %arg11[%c7, %c0_47] : memref<9x256xf32, #tpu.memory_space<vmem>>, vector<1x256xf32>
    %64 = vector.broadcast %63 : vector<1x256xf32> to vector<8x256xf32>
    %65 = arith.mulf %62, %64 : vector<8x256xf32>
    %c56 = arith.constant 56 : index
    %c0_48 = arith.constant 0 : index
    %66 = vector.load %arg13[%c56, %c0_48] : memref<72x256xf32, #tpu.memory_space<vmem>>, vector<8x256xf32>
    tpu.vector_store %arg13[%c56, %c0_48], %65 {strides = array<i32>} : memref<72x256xf32, #tpu.memory_space<vmem>>, vector<8x256xf32>,
    %c188_i32 = arith.constant 188 : i32
    %67 = tpu.dynamic_rotate %30 by %c188_i32 dim 1 : vector<8x256xf32>, i32 -> vector<8x256xf32>
    %c8_49 = arith.constant 8 : index
    %c0_50 = arith.constant 0 : index
    %68 = vector.load %arg11[%c8_49, %c0_50] : memref<9x256xf32, #tpu.memory_space<vmem>>, vector<1x256xf32>
    %69 = vector.broadcast %68 : vector<1x256xf32> to vector<8x256xf32>
    %70 = arith.mulf %67, %69 : vector<8x256xf32>
    %c64 = arith.constant 64 : index
    %c0_51 = arith.constant 0 : index
    %71 = vector.load %arg13[%c64, %c0_51] : memref<72x256xf32, #tpu.memory_space<vmem>>, vector<8x256xf32>
    tpu.vector_store %arg13[%c64, %c0_51], %70 {strides = array<i32>} : memref<72x256xf32, #tpu.memory_space<vmem>>, vector<8x256xf32>,
    %c0_52 = arith.constant 0 : index
    %c0_53 = arith.constant 0 : index
    %72 = vector.load %arg13[%c0_52, %c0_53] : memref<72x256xf32, #tpu.memory_space<vmem>>, vector<72x256xf32>
    %cst_54 = arith.constant dense<0.000000e+00> : vector<8x256xf32>
    %73 = tpu.matmul %6, %72, %cst_54 {dimension_numbers = #tpu.dot_dimension_numbers<[1], [0], [0], [1], [0, 0, 1, 1], [], []>} : vector<8x72xf32>, vector<72x256xf32>, vector<8x256xf32> -> vector<8x256xf32>
    %74 = vector.broadcast %10 : vector<8x1xf32> to vector<8x256xf32>
    %75 = arith.addf %73, %74 : vector<8x256xf32>
    %cst_55 = arith.constant 0.000000e+00 : f32
    %76 = vector.broadcast %cst_55 : f32 to vector<8x256xf32>
    %77 = arith.maximumf %75, %76 : vector<8x256xf32>
    %c68_i32_56 = arith.constant 68 : i32
    %78 = tpu.dynamic_rotate %77 by %c68_i32_56 dim 1 : vector<8x256xf32>, i32 -> vector<8x256xf32>
    %c0_57 = arith.constant 0 : index
    %c0_58 = arith.constant 0 : index
    %79 = vector.load %arg11[%c0_57, %c0_58] : memref<9x256xf32, #tpu.memory_space<vmem>>, vector<1x256xf32>
    %80 = vector.broadcast %79 : vector<1x256xf32> to vector<8x256xf32>
    %81 = arith.mulf %78, %80 : vector<8x256xf32>
    %c0_59 = arith.constant 0 : index
    %c0_60 = arith.constant 0 : index
    %82 = vector.load %arg13[%c0_59, %c0_60] : memref<72x256xf32, #tpu.memory_space<vmem>>, vector<8x256xf32>
    tpu.vector_store %arg13[%c0_59, %c0_60], %81 {strides = array<i32>} : memref<72x256xf32, #tpu.memory_space<vmem>>, vector<8x256xf32>,
    %c64_i32_61 = arith.constant 64 : i32
    %83 = tpu.dynamic_rotate %77 by %c64_i32_61 dim 1 : vector<8x256xf32>, i32 -> vector<8x256xf32>
    %c1_62 = arith.constant 1 : index
    %c0_63 = arith.constant 0 : index
    %84 = vector.load %arg11[%c1_62, %c0_63] : memref<9x256xf32, #tpu.memory_space<vmem>>, vector<1x256xf32>
    %85 = vector.broadcast %84 : vector<1x256xf32> to vector<8x256xf32>
    %86 = arith.mulf %83, %85 : vector<8x256xf32>
    %c8_64 = arith.constant 8 : index
    %c0_65 = arith.constant 0 : index
    %87 = vector.load %arg13[%c8_64, %c0_65] : memref<72x256xf32, #tpu.memory_space<vmem>>, vector<8x256xf32>
    tpu.vector_store %arg13[%c8_64, %c0_65], %86 {strides = array<i32>} : memref<72x256xf32, #tpu.memory_space<vmem>>, vector<8x256xf32>,
    %c60_i32_66 = arith.constant 60 : i32
    %88 = tpu.dynamic_rotate %77 by %c60_i32_66 dim 1 : vector<8x256xf32>, i32 -> vector<8x256xf32>
    %c2_67 = arith.constant 2 : index
    %c0_68 = arith.constant 0 : index
    %89 = vector.load %arg11[%c2_67, %c0_68] : memref<9x256xf32, #tpu.memory_space<vmem>>, vector<1x256xf32>
    %90 = vector.broadcast %89 : vector<1x256xf32> to vector<8x256xf32>
    %91 = arith.mulf %88, %90 : vector<8x256xf32>
    %c16_69 = arith.constant 16 : index
    %c0_70 = arith.constant 0 : index
    %92 = vector.load %arg13[%c16_69, %c0_70] : memref<72x256xf32, #tpu.memory_space<vmem>>, vector<8x256xf32>
    tpu.vector_store %arg13[%c16_69, %c0_70], %91 {strides = array<i32>} : memref<72x256xf32, #tpu.memory_space<vmem>>, vector<8x256xf32>,
    %c4_i32_71 = arith.constant 4 : i32
    %93 = tpu.dynamic_rotate %77 by %c4_i32_71 dim 1 : vector<8x256xf32>, i32 -> vector<8x256xf32>
    %c3_72 = arith.constant 3 : index
    %c0_73 = arith.constant 0 : index
    %94 = vector.load %arg11[%c3_72, %c0_73] : memref<9x256xf32, #tpu.memory_space<vmem>>, vector<1x256xf32>
    %95 = vector.broadcast %94 : vector<1x256xf32> to vector<8x256xf32>
    %96 = arith.mulf %93, %95 : vector<8x256xf32>
    %c24_74 = arith.constant 24 : index
    %c0_75 = arith.constant 0 : index
    %97 = vector.load %arg13[%c24_74, %c0_75] : memref<72x256xf32, #tpu.memory_space<vmem>>, vector<8x256xf32>
    tpu.vector_store %arg13[%c24_74, %c0_75], %96 {strides = array<i32>} : memref<72x256xf32, #tpu.memory_space<vmem>>, vector<8x256xf32>,
    %c32_76 = arith.constant 32 : index
    %c0_77 = arith.constant 0 : index
    %98 = vector.load %arg13[%c32_76, %c0_77] : memref<72x256xf32, #tpu.memory_space<vmem>>, vector<8x256xf32>
    tpu.vector_store %arg13[%c32_76, %c0_77], %77 {strides = array<i32>} : memref<72x256xf32, #tpu.memory_space<vmem>>, vector<8x256xf32>,
    %c252_i32_78 = arith.constant 252 : i32
    %99 = tpu.dynamic_rotate %77 by %c252_i32_78 dim 1 : vector<8x256xf32>, i32 -> vector<8x256xf32>
    %c5_79 = arith.constant 5 : index
    %c0_80 = arith.constant 0 : index
    %100 = vector.load %arg11[%c5_79, %c0_80] : memref<9x256xf32, #tpu.memory_space<vmem>>, vector<1x256xf32>
    %101 = vector.broadcast %100 : vector<1x256xf32> to vector<8x256xf32>
    %102 = arith.mulf %99, %101 : vector<8x256xf32>
    %c40_81 = arith.constant 40 : index
    %c0_82 = arith.constant 0 : index
    %103 = vector.load %arg13[%c40_81, %c0_82] : memref<72x256xf32, #tpu.memory_space<vmem>>, vector<8x256xf32>
    tpu.vector_store %arg13[%c40_81, %c0_82], %102 {strides = array<i32>} : memref<72x256xf32, #tpu.memory_space<vmem>>, vector<8x256xf32>,
    %c196_i32_83 = arith.constant 196 : i32
    %104 = tpu.dynamic_rotate %77 by %c196_i32_83 dim 1 : vector<8x256xf32>, i32 -> vector<8x256xf32>
    %c6_84 = arith.constant 6 : index
    %c0_85 = arith.constant 0 : index
    %105 = vector.load %arg11[%c6_84, %c0_85] : memref<9x256xf32, #tpu.memory_space<vmem>>, vector<1x256xf32>
    %106 = vector.broadcast %105 : vector<1x256xf32> to vector<8x256xf32>
    %107 = arith.mulf %104, %106 : vector<8x256xf32>
    %c48_86 = arith.constant 48 : index
    %c0_87 = arith.constant 0 : index
    %108 = vector.load %arg13[%c48_86, %c0_87] : memref<72x256xf32, #tpu.memory_space<vmem>>, vector<8x256xf32>
    tpu.vector_store %arg13[%c48_86, %c0_87], %107 {strides = array<i32>} : memref<72x256xf32, #tpu.memory_space<vmem>>, vector<8x256xf32>,
    %c192_i32_88 = arith.constant 192 : i32
    %109 = tpu.dynamic_rotate %77 by %c192_i32_88 dim 1 : vector<8x256xf32>, i32 -> vector<8x256xf32>
    %c7_89 = arith.constant 7 : index
    %c0_90 = arith.constant 0 : index
    %110 = vector.load %arg11[%c7_89, %c0_90] : memref<9x256xf32, #tpu.memory_space<vmem>>, vector<1x256xf32>
    %111 = vector.broadcast %110 : vector<1x256xf32> to vector<8x256xf32>
    %112 = arith.mulf %109, %111 : vector<8x256xf32>
    %c56_91 = arith.constant 56 : index
    %c0_92 = arith.constant 0 : index
    %113 = vector.load %arg13[%c56_91, %c0_92] : memref<72x256xf32, #tpu.memory_space<vmem>>, vector<8x256xf32>
    tpu.vector_store %arg13[%c56_91, %c0_92], %112 {strides = array<i32>} : memref<72x256xf32, #tpu.memory_space<vmem>>, vector<8x256xf32>,
    %c188_i32_93 = arith.constant 188 : i32
    %114 = tpu.dynamic_rotate %77 by %c188_i32_93 dim 1 : vector<8x256xf32>, i32 -> vector<8x256xf32>
    %c8_94 = arith.constant 8 : index
    %c0_95 = arith.constant 0 : index
    %115 = vector.load %arg11[%c8_94, %c0_95] : memref<9x256xf32, #tpu.memory_space<vmem>>, vector<1x256xf32>
    %116 = vector.broadcast %115 : vector<1x256xf32> to vector<8x256xf32>
    %117 = arith.mulf %114, %116 : vector<8x256xf32>
    %c64_96 = arith.constant 64 : index
    %c0_97 = arith.constant 0 : index
    %118 = vector.load %arg13[%c64_96, %c0_97] : memref<72x256xf32, #tpu.memory_space<vmem>>, vector<8x256xf32>
    tpu.vector_store %arg13[%c64_96, %c0_97], %117 {strides = array<i32>} : memref<72x256xf32, #tpu.memory_space<vmem>>, vector<8x256xf32>,
    %c0_98 = arith.constant 0 : index
    %c0_99 = arith.constant 0 : index
    %119 = vector.load %arg13[%c0_98, %c0_99] : memref<72x256xf32, #tpu.memory_space<vmem>>, vector<72x256xf32>
    %cst_100 = arith.constant dense<0.000000e+00> : vector<8x256xf32>
    %120 = tpu.matmul %8, %119, %cst_100 {dimension_numbers = #tpu.dot_dimension_numbers<[1], [0], [0], [1], [0, 0, 1, 1], [], []>} : vector<8x72xf32>, vector<72x256xf32>, vector<8x256xf32> -> vector<8x256xf32>
    %121 = vector.broadcast %12 : vector<8x1xf32> to vector<8x256xf32>
    %122 = arith.addf %120, %121 : vector<8x256xf32>
    %cst_101 = arith.constant 0.000000e+00 : f32
    %123 = vector.broadcast %cst_101 : f32 to vector<8x256xf32>
    %124 = arith.maximumf %122, %123 : vector<8x256xf32>
    %125 = vector.broadcast %13 : vector<8x1xf32> to vector<8x256xf32>
    %126 = arith.mulf %125, %124 : vector<8x256xf32>
    %cst_102 = arith.constant dense<0.000000e+00> : vector<256xf32>
    %127 = vector.multi_reduction <add>, %126, %cst_102 [0] : vector<8x256xf32> to vector<256xf32>
    %128 = vector.shape_cast %127 : vector<256xf32> to vector<1x256xf32>
    %129 = vector.broadcast %14 : vector<1x1xf32> to vector<1x256xf32>
    %130 = arith.addf %128, %129 : vector<1x256xf32>
    %131 = vector.broadcast %25 : vector<8x1xf32> to vector<8x256xf32>
    %132 = vector.broadcast %130 : vector<1x256xf32> to vector<8x256xf32>
    %133 = arith.mulf %131, %132 : vector<8x256xf32>
    %cst_103 = arith.constant dense<0.000000e+00> : vector<32x256xf32>
    %134 = tpu.matmul %3, %133, %cst_103 {dimension_numbers = #tpu.dot_dimension_numbers<[1], [0], [0], [1], [0, 0, 1, 1], [], []>} : vector<32x8xf32>, vector<8x256xf32>, vector<32x256xf32> -> vector<32x256xf32>
    %135 = vector.broadcast %4 : vector<32x1xf32> to vector<32x256xf32>
    %136 = vector.broadcast %130 : vector<1x256xf32> to vector<32x256xf32>
    %137 = arith.mulf %135, %136 : vector<32x256xf32>
    %138 = arith.addf %134, %137 : vector<32x256xf32>
    %cst_104 = arith.constant 0.000000e+00 : f32
    %139 = vector.broadcast %cst_104 : f32 to vector<32x256xf32>
    %140 = arith.subf %139, %138 : vector<32x256xf32>
    %141 = math.exp %140 : vector<32x256xf32>
    %cst_105 = arith.constant 1.000000e+00 : f32
    %142 = vector.broadcast %cst_105 : f32 to vector<32x256xf32>
    %143 = arith.addf %142, %141 : vector<32x256xf32>
    %144 = tpu.reciprocal %143 : vector<32x256xf32> -> vector<32x256xf32>
    %cst_106 = arith.constant 1.000000e+00 : f32
    %145 = vector.broadcast %cst_106 : f32 to vector<32x256xf32>
    %146 = arith.addf %145, %144 : vector<32x256xf32>
    %147 = arith.mulf %146, %16 : vector<32x256xf32>
    %c0_107 = arith.constant 0 : index
    %c0_108 = arith.constant 0 : index
    %c0_109 = arith.constant 0 : index
    %148 = vector.load %arg12[%c0_107, %c0_108, %c0_109] : memref<1x32x256xf32, #tpu.memory_space<vmem>>, vector<1x32x256xf32>
    %149 = vector.shape_cast %148 : vector<1x32x256xf32> to vector<32x256xf32>
    %150 = vector.shape_cast %147 : vector<32x256xf32> to vector<1x32x256xf32>
    tpu.vector_store %arg12[%c0_107, %c0_108, %c0_109], %150 {strides = array<i32>} : memref<1x32x256xf32, #tpu.memory_space<vmem>>, vector<1x32x256xf32>,
    return
  }
  func.func @transform_0(%arg0: i32) -> (i32, i32, i32) {
    %c0_i32 = arith.constant 0 : i32
    %c0_i32_0 = arith.constant 0 : i32
    %c0_i32_1 = arith.constant 0 : i32
    return %arg0, %c0_i32, %c0_i32_0 : i32, i32, i32
  }
  func.func @transform_1(%arg0: i32) -> (i32, i32) {
    %c0_i32 = arith.constant 0 : i32
    %c0_i32_0 = arith.constant 0 : i32
    %c0_i32_1 = arith.constant 0 : i32
    return %c0_i32, %c0_i32_0 : i32, i32
  }
  func.func @transform_2(%arg0: i32) -> (i32, i32) {
    %c0_i32 = arith.constant 0 : i32
    %c0_i32_0 = arith.constant 0 : i32
    %c0_i32_1 = arith.constant 0 : i32
    return %c0_i32, %c0_i32_0 : i32, i32
  }
  func.func @transform_3(%arg0: i32) -> (i32, i32) {
    %c0_i32 = arith.constant 0 : i32
    %c0_i32_0 = arith.constant 0 : i32
    %c0_i32_1 = arith.constant 0 : i32
    return %c0_i32, %c0_i32_0 : i32, i32
  }
  func.func @transform_4(%arg0: i32) -> (i32, i32) {
    %c0_i32 = arith.constant 0 : i32
    %c0_i32_0 = arith.constant 0 : i32
    %c0_i32_1 = arith.constant 0 : i32
    return %c0_i32, %c0_i32_0 : i32, i32
  }
  func.func @transform_5(%arg0: i32) -> (i32, i32) {
    %c0_i32 = arith.constant 0 : i32
    %c0_i32_0 = arith.constant 0 : i32
    %c0_i32_1 = arith.constant 0 : i32
    return %c0_i32, %c0_i32_0 : i32, i32
  }
  func.func @transform_6(%arg0: i32) -> (i32, i32, i32) {
    %c0_i32 = arith.constant 0 : i32
    %c0_i32_0 = arith.constant 0 : i32
    %c0_i32_1 = arith.constant 0 : i32
    %c0_i32_2 = arith.constant 0 : i32
    return %c0_i32, %c0_i32_0, %c0_i32_1 : i32, i32, i32
  }
  func.func @transform_7(%arg0: i32) -> (i32, i32, i32) {
    %c0_i32 = arith.constant 0 : i32
    %c0_i32_0 = arith.constant 0 : i32
    %c0_i32_1 = arith.constant 0 : i32
    %c0_i32_2 = arith.constant 0 : i32
    return %c0_i32, %c0_i32_0, %c0_i32_1 : i32, i32, i32
  }
  func.func @transform_8(%arg0: i32) -> (i32, i32) {
    %c0_i32 = arith.constant 0 : i32
    %c0_i32_0 = arith.constant 0 : i32
    %c0_i32_1 = arith.constant 0 : i32
    return %c0_i32, %c0_i32_0 : i32, i32
  }
  func.func @transform_9(%arg0: i32) -> (i32, i32) {
    %c0_i32 = arith.constant 0 : i32
    %c0_i32_0 = arith.constant 0 : i32
    %c0_i32_1 = arith.constant 0 : i32
    return %c0_i32, %c0_i32_0 : i32, i32
  }
  func.func @transform_10(%arg0: i32) -> (i32, i32) {
    %c0_i32 = arith.constant 0 : i32
    %c0_i32_0 = arith.constant 0 : i32
    %c0_i32_1 = arith.constant 0 : i32
    return %c0_i32, %c0_i32_0 : i32, i32
  }
  func.func @transform_11(%arg0: i32) -> (i32, i32, i32) {
    %c0_i32 = arith.constant 0 : i32
    %c0_i32_0 = arith.constant 0 : i32
    %c0_i32_1 = arith.constant 0 : i32
    return %arg0, %c0_i32, %c0_i32_0 : i32, i32, i32
  }
}

</mosaic_0001>

<llo_original>
// kernel: tpu_custom_call.1
$region0: #{tpu_custom_call.1}
  #allocation0 [shape = 'u32[]', space=smem, size = 0x4, offset = 0x4, fixed_abs, tag = 'smem constant byte address 0x4 - core index']
  #allocation1 [shape = 'u32[72,128]{1,0:T(1,128)}', space=vmem, size = 0x9000, scoped, tag = 'internal scratch']
  #allocation2 [shape = 'f32[72,256]{1,0:T(8,128)}', space=vmem, size = 0x12000, scoped, tag = 'scratch operand']
  #allocation3 [shape = 'f32[1,1]{1,0:T(1,128)S(1)}', space=vmem, size = 0x200, scoped, tag = 'scoped memory for tpu_custom_call.1']
  %s0 = inlined_call_operand.hbm [shape: f32[2,32,256], index: 0, kind: input, shape index: {}]
  %s1 = inlined_call_operand.vmem [shape: f32[16,32], index: 1, kind: input, shape index: {}]
  %s2 = inlined_call_operand.vmem [shape: f32[8,1], index: 2, kind: input, shape index: {}]
  %s3 = inlined_call_operand.vmem [shape: f32[8,1], index: 3, kind: input, shape index: {}]
  %s4 = inlined_call_operand.vmem [shape: f32[32,8], index: 4, kind: input, shape index: {}]
  %s5 = inlined_call_operand.vmem [shape: f32[32,1], index: 5, kind: input, shape index: {}]
  %s6 = inlined_call_operand.vmem [shape: f32[2,8,72], index: 6, kind: input, shape index: {}]
  %s7 = inlined_call_operand.vmem [shape: f32[2,8,1], index: 7, kind: input, shape index: {}]
  %s8 = inlined_call_operand.vmem [shape: f32[8,1], index: 8, kind: input, shape index: {}]
  %s9 = inlined_call_operand.<no memory space> [shape: f32[1,1], index: 9, kind: input, shape index: {}]
  %s10 = inlined_call_operand.vmem [shape: f32[9,256], index: 10, kind: input, shape index: {}]
  %s11 = inlined_call_operand.hbm [shape: f32[2,32,256], index: 11, kind: output, shape index: {}]
  %s12 = sld [smem:[#allocation0]]
  $region81: #{tpu_custom_call.1} parent=0
    _
  %s14 = ssub.s32 1, %s12
  %s15 = scalar_select 0, %s14, %s12
  %v16 = vstv %s9
  %17 = vst [vmem:[#allocation3] sm:$0x1] %v16
  $region1: #{tpu_custom_call.1} parent=0
    #allocation4 [shape = 'u8[65536]{0}', space=vmem, size = 0x10000, scoped, tag = 'input window, operand 0']
    #allocation5 [shape = 's32[2]{0}', space=sflag, size = 0x8, scoped, tag = 'scoped memory for tpu_custom_call.1']
    #allocation6 [shape = 's32[2]{0}', space=sflag, size = 0x8, scoped, tag = 'scoped memory for tpu_custom_call.1']
    #allocation7 [shape = 'u8[65536]{0}', space=vmem, size = 0x10000, scoped, tag = 'output window, operand 0']
    %18 = vsyncpa [#allocation5], 0
    %s19 = scalar_lea.sflag [#allocation5], 1
    %20 = vsyncpa %s19, 0
    %21 = vsyncpa [#allocation6], 0
    %s22 = scalar_lea.sflag [#allocation6], 1
    %23 = vsyncpa %s22, 0
    loop: start=0, step=1, limit=4
    $region2: #{tpu_custom_call.1} parent=1 // loop_pre_header
      _
    $region3: #{tpu_custom_call.1} parent=1 // loop_header
      %s25 = sphi 0, %s29
      %p26 = scmp.ge.s32.totalorder %s25, 4
      %s35 = sphi 0, %s37
      %s38 = sphi 0, %s35
      %s39 = sphi 0, %s38
      %s55 = sphi 0, %s39
      %s59 = sphi 0, %s59
      %s61 = sphi 0, %s59
      %s62 = sphi 0, %s61
      %s76 = sphi 0, %s62
      %s80 = sphi 0, %s80
      %s82 = sphi 0, %s80
      %s83 = sphi 0, %s82
      %s97 = sphi 0, %s83
      %s101 = sphi 0, %s101
      %s103 = sphi 0, %s101
      %s104 = sphi 0, %s103
      %s118 = sphi 0, %s104
      %s122 = sphi 0, %s122
      %s124 = sphi 0, %s122
      %s125 = sphi 0, %s124
      %s139 = sphi 0, %s125
      %s143 = sphi 0, %s143
      %s145 = sphi 0, %s143
      %s146 = sphi 0, %s145
      %s160 = sphi 0, %s146
      %s164 = sphi 0, %s164
      %s166 = sphi 0, %s164
      %s167 = sphi 0, %s166
      %s181 = sphi 0, %s167
      %s185 = sphi 0, %s185
      %s187 = sphi 0, %s185
      %s188 = sphi 0, %s187
      %s202 = sphi 0, %s188
      %s206 = sphi 0, %s206
      %s208 = sphi 0, %s206
      %s209 = sphi 0, %s208
      %s223 = sphi 0, %s209
      %s227 = sphi 0, %s227
      %s229 = sphi 0, %s227
      %s230 = sphi 0, %s229
      %s244 = sphi 0, %s230
      %s248 = sphi 0, %s248
      %s250 = sphi 0, %s248
      %s251 = sphi 0, %s250
      %s265 = sphi 0, %s251
      %s271 = sphi 0, %s273
      %s274 = sphi 0, %s271
      %s275 = sphi 0, %s274
      %s291 = sphi 0, %s275
    $region4: #{tpu_custom_call.1} parent=1 // loop_header_branch
      %28 = sbr.rel (%p26) target = $region8
    $region5: #{tpu_custom_call.1} parent=1 // loop_body
      %s30 = ssub.s32 %s25, 1
      %s31 = ssub.s32 %s25, 2
      %s32 = sadd.s32 %s25, 1
      %s33 = ssub.s32 %s25, %s32
      %p34 = scmp.eq.s32.totalorder %s33, 0
      %s36 = sadd.s32 %s35, 1
      %s37 = scalar_select %p34, %s35, %s36
      %p40 = pneg %p34
      %p41 = scmp.eq.s32.totalorder %s25, 1
      %p42 = por %p40, %p41
      %p43 = scmp.ne.s32.totalorder %s35, %s38
      %p44 = scmp.eq.s32.totalorder %s25, 0
      %p45 = por %p43, %p44
      %p46 = scmp.ne.s32.totalorder %s35, %s38
      %p47 = scmp.eq.s32.totalorder %s30, 1
      %p48 = por %p46, %p47
      %p49 = scmp.ne.s32.totalorder %s38, %s39
      %p50 = scmp.eq.s32.totalorder %s30, 0
      %p51 = por %p49, %p50
      %p52 = scmp.ne.s32.totalorder %s38, %s39
      %p53 = scmp.eq.s32.totalorder %s31, 1
      %p54 = por %p52, %p53
      %p56 = scmp.ne.s32.totalorder %s39, %s55
      %p57 = scmp.eq.s32.totalorder %s31, 0
      %p58 = por %p56, %p57
      %s60 = sadd.s32 %s59, 1
      %p63 = scmp.eq.s32.totalorder %s25, 1
      %p64 = scmp.ne.s32.totalorder %s59, %s61
      %p65 = scmp.eq.s32.totalorder %s25, 0
      %p66 = por %p64, %p65
      %p67 = scmp.ne.s32.totalorder %s59, %s61
      %p68 = scmp.eq.s32.totalorder %s30, 1
      %p69 = por %p67, %p68
      %p70 = scmp.ne.s32.totalorder %s61, %s62
      %p71 = scmp.eq.s32.totalorder %s30, 0
      %p72 = por %p70, %p71
      %p73 = scmp.ne.s32.totalorder %s61, %s62
      %p74 = scmp.eq.s32.totalorder %s31, 1
      %p75 = por %p73, %p74
      %p77 = scmp.ne.s32.totalorder %s62, %s76
      %p78 = scmp.eq.s32.totalorder %s31, 0
      %p79 = por %p77, %p78
      %s81 = sadd.s32 %s80, 1
      %p84 = scmp.eq.s32.totalorder %s25, 1
      %p85 = scmp.ne.s32.totalorder %s80, %s82
      %p86 = scmp.eq.s32.totalorder %s25, 0
      %p87 = por %p85, %p86
      %p88 = scmp.ne.s32.totalorder %s80, %s82
      %p89 = scmp.eq.s32.totalorder %s30, 1
      %p90 = por %p88, %p89
      %p91 = scmp.ne.s32.totalorder %s82, %s83
      %p92 = scmp.eq.s32.totalorder %s30, 0
      %p93 = por %p91, %p92
      %p94 = scmp.ne.s32.totalorder %s82, %s83
      %p95 = scmp.eq.s32.totalorder %s31, 1
      %p96 = por %p94, %p95
      %p98 = scmp.ne.s32.totalorder %s83, %s97
      %p99 = scmp.eq.s32.totalorder %s31, 0
      %p100 = por %p98, %p99
      %s102 = sadd.s32 %s101, 1
      %p105 = scmp.eq.s32.totalorder %s25, 1
      %p106 = scmp.ne.s32.totalorder %s101, %s103
      %p107 = scmp.eq.s32.totalorder %s25, 0
      %p108 = por %p106, %p107
      %p109 = scmp.ne.s32.totalorder %s101, %s103
      %p110 = scmp.eq.s32.totalorder %s30, 1
      %p111 = por %p109, %p110
      %p112 = scmp.ne.s32.totalorder %s103, %s104
      %p113 = scmp.eq.s32.totalorder %s30, 0
      %p114 = por %p112, %p113
      %p115 = scmp.ne.s32.totalorder %s103, %s104
      %p116 = scmp.eq.s32.totalorder %s31, 1
      %p117 = por %p115, %p116
      %p119 = scmp.ne.s32.totalorder %s104, %s118
      %p120 = scmp.eq.s32.totalorder %s31, 0
      %p121 = por %p119, %p120
      %s123 = sadd.s32 %s122, 1
      %p126 = scmp.eq.s32.totalorder %s25, 1
      %p127 = scmp.ne.s32.totalorder %s122, %s124
      %p128 = scmp.eq.s32.totalorder %s25, 0
      %p129 = por %p127, %p128
      %p130 = scmp.ne.s32.totalorder %s122, %s124
      %p131 = scmp.eq.s32.totalorder %s30, 1
      %p132 = por %p130, %p131
      %p133 = scmp.ne.s32.totalorder %s124, %s125
      %p134 = scmp.eq.s32.totalorder %s30, 0
      %p135 = por %p133, %p134
      %p136 = scmp.ne.s32.totalorder %s124, %s125
      %p137 = scmp.eq.s32.totalorder %s31, 1
      %p138 = por %p136, %p137
      %p140 = scmp.ne.s32.totalorder %s125, %s139
      %p141 = scmp.eq.s32.totalorder %s31, 0
      %p142 = por %p140, %p141
      %s144 = sadd.s32 %s143, 1
      %p147 = scmp.eq.s32.totalorder %s25, 1
      %p148 = scmp.ne.s32.totalorder %s143, %s145
      %p149 = scmp.eq.s32.totalorder %s25, 0
      %p150 = por %p148, %p149
      %p151 = scmp.ne.s32.totalorder %s143, %s145
      %p152 = scmp.eq.s32.totalorder %s30, 1
      %p153 = por %p151, %p152
      %p154 = scmp.ne.s32.totalorder %s145, %s146
      %p155 = scmp.eq.s32.totalorder %s30, 0
      %p156 = por %p154, %p155
      %p157 = scmp.ne.s32.totalorder %s145, %s146
      %p158 = scmp.eq.s32.totalorder %s31, 1
      %p159 = por %p157, %p158
      %p161 = scmp.ne.s32.totalorder %s146, %s160
      %p162 = scmp.eq.s32.totalorder %s31, 0
      %p163 = por %p161, %p162
      %s165 = sadd.s32 %s164, 1
      %p168 = scmp.eq.s32.totalorder %s25, 1
      %p169 = scmp.ne.s32.totalorder %s164, %s166
      %p170 = scmp.eq.s32.totalorder %s25, 0
      %p171 = por %p169, %p170
      %p172 = scmp.ne.s32.totalorder %s164, %s166
      %p173 = scmp.eq.s32.totalorder %s30, 1
      %p174 = por %p172, %p173
      %p175 = scmp.ne.s32.totalorder %s166, %s167
      %p176 = scmp.eq.s32.totalorder %s30, 0
      %p177 = por %p175, %p176
      %p178 = scmp.ne.s32.totalorder %s166, %s167
      %p179 = scmp.eq.s32.totalorder %s31, 1
      %p180 = por %p178, %p179
      %p182 = scmp.ne.s32.totalorder %s167, %s181
      %p183 = scmp.eq.s32.totalorder %s31, 0
      %p184 = por %p182, %p183
      %s186 = sadd.s32 %s185, 1
      %p189 = scmp.eq.s32.totalorder %s25, 1
      %p190 = scmp.ne.s32.totalorder %s185, %s187
      %p191 = scmp.eq.s32.totalorder %s25, 0
      %p192 = por %p190, %p191
      %p193 = scmp.ne.s32.totalorder %s185, %s187
      %p194 = scmp.eq.s32.totalorder %s30, 1
      %p195 = por %p193, %p194
      %p196 = scmp.ne.s32.totalorder %s187, %s188
      %p197 = scmp.eq.s32.totalorder %s30, 0
      %p198 = por %p196, %p197
      %p199 = scmp.ne.s32.totalorder %s187, %s188
      %p200 = scmp.eq.s32.totalorder %s31, 1
      %p201 = por %p199, %p200
      %p203 = scmp.ne.s32.totalorder %s188, %s202
      %p204 = scmp.eq.s32.totalorder %s31, 0
      %p205 = por %p203, %p204
      %s207 = sadd.s32 %s206, 1
      %p210 = scmp.eq.s32.totalorder %s25, 1
      %p211 = scmp.ne.s32.totalorder %s206, %s208
      %p212 = scmp.eq.s32.totalorder %s25, 0
      %p213 = por %p211, %p212
      %p214 = scmp.ne.s32.totalorder %s206, %s208
      %p215 = scmp.eq.s32.totalorder %s30, 1
      %p216 = por %p214, %p215
      %p217 = scmp.ne.s32.totalorder %s208, %s209
      %p218 = scmp.eq.s32.totalorder %s30, 0
      %p219 = por %p217, %p218
      %p220 = scmp.ne.s32.totalorder %s208, %s209
      %p221 = scmp.eq.s32.totalorder %s31, 1
      %p222 = por %p220, %p221
      %p224 = scmp.ne.s32.totalorder %s209, %s223
      %p225 = scmp.eq.s32.totalorder %s31, 0
      %p226 = por %p224, %p225
      %s228 = sadd.s32 %s227, 1
      %p231 = scmp.eq.s32.totalorder %s25, 1
      %p232 = scmp.ne.s32.totalorder %s227, %s229
      %p233 = scmp.eq.s32.totalorder %s25, 0
      %p234 = por %p232, %p233
      %p235 = scmp.ne.s32.totalorder %s227, %s229
      %p236 = scmp.eq.s32.totalorder %s30, 1
      %p237 = por %p235, %p236
      %p238 = scmp.ne.s32.totalorder %s229, %s230
      %p239 = scmp.eq.s32.totalorder %s30, 0
      %p240 = por %p238, %p239
      %p241 = scmp.ne.s32.totalorder %s229, %s230
      %p242 = scmp.eq.s32.totalorder %s31, 1
      %p243 = por %p241, %p242
      %p245 = scmp.ne.s32.totalorder %s230, %s244
      %p246 = scmp.eq.s32.totalorder %s31, 0
      %p247 = por %p245, %p246
      %s249 = sadd.s32 %s248, 1
      %p252 = scmp.eq.s32.totalorder %s25, 1
      %p253 = scmp.ne.s32.totalorder %s248, %s250
      %p254 = scmp.eq.s32.totalorder %s25, 0
      %p255 = por %p253, %p254
      %p256 = scmp.ne.s32.totalorder %s248, %s250
      %p257 = scmp.eq.s32.totalorder %s30, 1
      %p258 = por %p256, %p257
      %p259 = scmp.ne.s32.totalorder %s250, %s251
      %p260 = scmp.eq.s32.totalorder %s30, 0
      %p261 = por %p259, %p260
      %p262 = scmp.ne.s32.totalorder %s250, %s251
      %p263 = scmp.eq.s32.totalorder %s31, 1
      %p264 = por %p262, %p263
      %p266 = scmp.ne.s32.totalorder %s251, %s265
      %p267 = scmp.eq.s32.totalorder %s31, 0
      %p268 = por %p266, %p267
      %s269 = ssub.s32 %s25, %s32
      %p270 = scmp.eq.s32.totalorder %s269, 0
      %s272 = sadd.s32 %s271, 1
      %s273 = scalar_select %p270, %s271, %s272
      %p276 = pneg %p270
      %p277 = scmp.eq.s32.totalorder %s25, 1
      %p278 = por %p276, %p277
      %p279 = scmp.ne.s32.totalorder %s271, %s274
      %p280 = scmp.eq.s32.totalorder %s25, 0
      %p281 = por %p279, %p280
      %p282 = scmp.ne.s32.totalorder %s271, %s274
      %p283 = scmp.eq.s32.totalorder %s30, 1
      %p284 = por %p282, %p283
      %p285 = scmp.ne.s32.totalorder %s274, %s275
      %p286 = scmp.eq.s32.totalorder %s30, 0
      %p287 = por %p285, %p286
      %p288 = scmp.ne.s32.totalorder %s274, %s275
      %p289 = scmp.eq.s32.totalorder %s31, 1
      %p290 = por %p288, %p289
      %p292 = scmp.ne.s32.totalorder %s275, %s291
      %p293 = scmp.eq.s32.totalorder %s31, 0
      %p294 = por %p292, %p293
      %p295 = scmp.le.s32.totalorder 1, %s25
      %p296 = scmp.lt.s32.totalorder %s25, 3
      %p297 = pnand %p295, %p296
      %p298 = pneg %p297
      // Predicated region
      $region9: #{tpu_custom_call.1} parent=5 // pred_check
        _
      $region10: #{tpu_custom_call.1} parent=5 // pred_check_branch
        %300 = sbr.rel (%p297) target = $region12
      $region11: #{tpu_custom_call.1} parent=5 // pred_region
        %s301 = ssub.s32 %s25, 1
        // Predicated region
        $region13: #{tpu_custom_call.1} parent=11 // pred_check
          %p302 = pneg %p72
        $region14: #{tpu_custom_call.1} parent=11 // pred_check_branch
          %304 = sbr.rel (%p302) target = $region16
        $region15: #{tpu_custom_call.1} parent=11 // pred_region
          _
        $region16: #{tpu_custom_call.1} parent=11 // pred_fallthru
          _
        // Predicated region
        $region17: #{tpu_custom_call.1} parent=11 // pred_check
          %p305 = pneg %p93
        $region18: #{tpu_custom_call.1} parent=11 // pred_check_branch
          %307 = sbr.rel (%p305) target = $region20
        $region19: #{tpu_custom_call.1} parent=11 // pred_region
          _
        $region20: #{tpu_custom_call.1} parent=11 // pred_fallthru
          _
        // Predicated region
        $region21: #{tpu_custom_call.1} parent=11 // pred_check
          %p308 = pneg %p114
        $region22: #{tpu_custom_call.1} parent=11 // pred_check_branch
          %310 = sbr.rel (%p308) target = $region24
        $region23: #{tpu_custom_call.1} parent=11 // pred_region
          _
        $region24: #{tpu_custom_call.1} parent=11 // pred_fallthru
          _
        // Predicated region
        $region25: #{tpu_custom_call.1} parent=11 // pred_check
          %p311 = pneg %p135
        $region26: #{tpu_custom_call.1} parent=11 // pred_check_branch
          %313 = sbr.rel (%p311) target = $region28
        $region27: #{tpu_custom_call.1} parent=11 // pred_region
          _
        $region28: #{tpu_custom_call.1} parent=11 // pred_fallthru
          _
        // Predicated region
        $region29: #{tpu_custom_call.1} parent=11 // pred_check
          %p314 = pneg %p156
        $region30: #{tpu_custom_call.1} parent=11 // pred_check_branch
          %316 = sbr.rel (%p314) target = $region32
        $region31: #{tpu_custom_call.1} parent=11 // pred_region
          _
        $region32: #{tpu_custom_call.1} parent=11 // pred_fallthru
          _
        // Predicated region
        $region33: #{tpu_custom_call.1} parent=11 // pred_check
          %p317 = pneg %p177
        $region34: #{tpu_custom_call.1} parent=11 // pred_check_branch
          %319 = sbr.rel (%p317) target = $region36
        $region35: #{tpu_custom_call.1} parent=11 // pred_region
          _
        $region36: #{tpu_custom_call.1} parent=11 // pred_fallthru
          _
        // Predicated region
        $region37: #{tpu_custom_call.1} parent=11 // pred_check
          %p320 = pneg %p198
        $region38: #{tpu_custom_call.1} parent=11 // pred_check_branch
          %322 = sbr.rel (%p320) target = $region40
        $region39: #{tpu_custom_call.1} parent=11 // pred_region
          _
        $region40: #{tpu_custom_call.1} parent=11 // pred_fallthru
          _
        // Predicated region
        $region41: #{tpu_custom_call.1} parent=11 // pred_check
          %p323 = pneg %p219
        $region42: #{tpu_custom_call.1} parent=11 // pred_check_branch
          %325 = sbr.rel (%p323) target = $region44
        $region43: #{tpu_custom_call.1} parent=11 // pred_region
          _
        $region44: #{tpu_custom_call.1} parent=11 // pred_fallthru
          _
        // Predicated region
        $region45: #{tpu_custom_call.1} parent=11 // pred_check
          %p326 = pneg %p240
        $region46: #{tpu_custom_call.1} parent=11 // pred_check_branch
          %328 = sbr.rel (%p326) target = $region48
        $region47: #{tpu_custom_call.1} parent=11 // pred_region
          _
        $region48: #{tpu_custom_call.1} parent=11 // pred_fallthru
          _
        // Predicated region
        $region49: #{tpu_custom_call.1} parent=11 // pred_check
          %p329 = pneg %p261
        $region50: #{tpu_custom_call.1} parent=11 // pred_check_branch
          %331 = sbr.rel (%p329) target = $region52
        $region51: #{tpu_custom_call.1} parent=11 // pred_region
          _
        $region52: #{tpu_custom_call.1} parent=11 // pred_fallthru
          _
      $region12: #{tpu_custom_call.1} parent=5 // pred_fallthru
        _
      %p332 = scmp.lt.s32.totalorder %s25, 2
      // Predicated region
      $region53: #{tpu_custom_call.1} parent=5 // pred_check
        %p333 = pneg %p332
      $region54: #{tpu_custom_call.1} parent=5 // pred_check_branch
        %335 = sbr.rel (%p333) target = $region56
      $region55: #{tpu_custom_call.1} parent=5 // pred_region
        // Predicated region
        $region57: #{tpu_custom_call.1} parent=55 // pred_check
          %p336 = pneg %p45
        $region58: #{tpu_custom_call.1} parent=55 // pred_check_branch
          %338 = sbr.rel (%p336) target = $region60
        $region59: #{tpu_custom_call.1} parent=55 // pred_region
          %s339 = sand.u32 %s35, 1
          %s340 = scalar_lea.sflag [#allocation5], %s339
          %s341 = sand.u32 %s35, 1
          %s342 = smul.addr %s341, 64
          %s343 = scalar_lea.vmem [#allocation4], %s342
          %345 = vsyncadd %s340, 0
          %s346 = smul.addr %s25, 8
          %s347 = smul.addr %s346, 8
          %s348 = scalar_lea.hbm %s0, %s347
          %s349 = sshll.u32 %s348, 4
          %s350 = int_to_ptr.hbm [resolvable:$true] %s349
          %s351 = sshll.u32 %s343, 4
          %s352 = int_to_ptr.vmem [resolvable:$true] %s351
          %357 = dma.hbm_to_vmem [thread:$0]  %s350, 1024, %s352, %s340, 256, 256, 16
        $region60: #{tpu_custom_call.1} parent=55 // pred_fallthru
          _
      $region56: #{tpu_custom_call.1} parent=5 // pred_fallthru
        _
      %p358 = scmp.le.s32.totalorder 1, %s25
      %p359 = scmp.lt.s32.totalorder %s25, 3
      %p360 = pnand %p358, %p359
      %p361 = pneg %p360
      // Predicated region
      $region61: #{tpu_custom_call.1} parent=5 // pred_check
        _
      $region62: #{tpu_custom_call.1} parent=5 // pred_check_branch
        %363 = sbr.rel (%p360) target = $region64
      $region63: #{tpu_custom_call.1} parent=5 // pred_region
        %s364 = ssub.s32 %s25, 1
        %s365 = sand.u32 %s38, 1
        %s366 = scalar_lea.sflag [#allocation5], %s365
        %s367 = sand.u32 %s38, 1
        %s368 = smul.addr %s367, 64
        %s369 = scalar_lea.vmem [#allocation4], %s368
        // Predicated region
        $region65: #{tpu_custom_call.1} parent=63 // pred_check
          %p370 = pneg %p51
        $region66: #{tpu_custom_call.1} parent=63 // pred_check_branch
          %372 = sbr.rel (%p370) target = $region68
        $region67: #{tpu_custom_call.1} parent=63 // pred_region
          %374 = dma.done %s366, 1024
        $region68: #{tpu_custom_call.1} parent=63 // pred_fallthru
          _
        %s375 = sand.u32 %s38, 1
        %s376 = scalar_lea.sflag [#allocation5], %s375
        %s377 = sand.u32 %s38, 1
        %s378 = smul.addr %s377, 64
        %s379 = scalar_lea.vmem [#allocation4], %s378
        %p380 = pneg %p51
        %p381 = pneg %p48
        %p382 = pneg %p72
        %p383 = pneg %p69
        %p384 = pneg %p93
        %p385 = pneg %p90
        %p386 = pneg %p114
        %p387 = pneg %p111
        %p388 = pneg %p135
        %p389 = pneg %p132
        %p390 = pneg %p156
        %p391 = pneg %p153
        %p392 = pneg %p177
        %p393 = pneg %p174
        %p394 = pneg %p198
        %p395 = pneg %p195
        %p396 = pneg %p219
        %p397 = pneg %p216
        %p398 = pneg %p240
        %p399 = pneg %p237
        %p400 = pneg %p261
        %p401 = pneg %p258
        %p402 = pneg %p287
        %p403 = pneg %p284
        %s404 = sand.u32 %s274, 1
        %s405 = scalar_lea.sflag [#allocation6], %s404
        %s406 = sand.u32 %s274, 1
        %s407 = smul.addr %s406, 64
        %s408 = scalar_lea.vmem [#allocation7], %s407
        %v409 = vld [vmem:[%s1] sm:$0xff]
        %v410 = vld [vmem:[%s1 + $0x8] sm:$0xff]
        %v411 = vld [vmem:[%s2] sm:$0xff]
        %v412 = vld [vmem:[%s3] sm:$0xff]
        %v413 = vld [vmem:[%s4] sm:$0xff]
        %v414 = vld [vmem:[%s4 + $0x8] sm:$0xff]
        %v415 = vld [vmem:[%s4 + $0x10] sm:$0xff]
        %v416 = vld [vmem:[%s4 + $0x18] sm:$0xff]
        %v417 = vld [vmem:[%s5] sm:$0xff]
        %v418 = vld [vmem:[%s5 + $0x8] sm:$0xff]
        %v419 = vld [vmem:[%s5 + $0x10] sm:$0xff]
        %v420 = vld [vmem:[%s5 + $0x18] sm:$0xff]
        %v421 = vld [vmem:[%s6] sm:$0xff]
        %s422 = scalar_lea.vmem %s6, 8
        %v423 = vld [vmem:[%s422] sm:$0xff]
        %v424 = vld [vmem:[%s7] sm:$0xff]
        %s425 = scalar_lea.vmem %s7, 8
        %v426 = vld [vmem:[%s425] sm:$0xff]
        %v427 = vld [vmem:[%s8] sm:$0xff]
        %v428 = vld [vmem:[#allocation3] sm:$0x1]
        %v429 = vld [vmem:[%s369] sm:$0xff]
        %v430 = vld [vmem:[%s369 + $0x8] sm:$0xff]
        %v431 = vld [vmem:[%s369 + $0x10] sm:$0xff]
        %v432 = vld [vmem:[%s369 + $0x18] sm:$0xff]
        %v433 = vld [vmem:[%s369 + $0x20] sm:$0xff]
        %v434 = vld [vmem:[%s369 + $0x28] sm:$0xff]
        %v435 = vld [vmem:[%s369 + $0x30] sm:$0xff]
        %v436 = vld [vmem:[%s369 + $0x38] sm:$0xff]
        %vm437 = vcmask 261120
        %v439 = vsel %vm437, %v409, 0
        %v442 = vsel %vm437, %v410, 0
        %444 = vmatpush.msra.mxu0 0.0
        %445 = vmatpush.msra.mxu0 0.0
        %446 = vmatpush.msra.mxu0 0.0
        %447 = vmatpush.msra.mxu0 0.0
        %448 = vmatpush.msra.mxu0 0.0
        %449 = vmatpush.msra.mxu0 0.0
        %450 = vmatpush.msra.mxu0 0.0
        %451 = vmatpush.msra.mxu0 0.0
        %452 = vmatpush.msra.mxu0 0.0
        %453 = vmatpush.msra.mxu0 0.0
        %454 = vmatpush.msra.mxu0 0.0
        %455 = vmatpush.msra.mxu0 0.0
        %456 = vmatpush.msra.mxu0 %v435
        %457 = vmatpush.msra.mxu0 %v433
        %458 = vmatpush.msra.mxu0 %v431
        %459 = vmatpush.msra.mxu0 %v429
        %460 = vmatmul.f32.gmra.mxu0 %v439
        %v461 = vpop.f32.mrf.mxu0
        %v462 = vadd.f32 0.0, %v461
        %463 = vmatmul.f32.gmra.mxu0 %v442
        %v464 = vpop.f32.mrf.mxu0
        %v465 = vadd.f32 0.0, %v464
        %466 = vdwg.mxu0
        %467 = vmatpush.msra.mxu0 0.0
        %468 = vmatpush.msra.mxu0 0.0
        %469 = vmatpush.msra.mxu0 0.0
        %470 = vmatpush.msra.mxu0 0.0
        %471 = vmatpush.msra.mxu0 0.0
        %472 = vmatpush.msra.mxu0 0.0
        %473 = vmatpush.msra.mxu0 0.0
        %474 = vmatpush.msra.mxu0 0.0
        %475 = vmatpush.msra.mxu0 0.0
        %476 = vmatpush.msra.mxu0 0.0
        %477 = vmatpush.msra.mxu0 0.0
        %478 = vmatpush.msra.mxu0 0.0
        %479 = vmatpush.msra.mxu0 %v436
        %480 = vmatpush.msra.mxu0 %v434
        %481 = vmatpush.msra.mxu0 %v432
        %482 = vmatpush.msra.mxu0 %v430
        %483 = vmatmul.f32.gmra.mxu0 %v439
        %v484 = vpop.f32.mrf.mxu0
        %v485 = vadd.f32 0.0, %v484
        %486 = vmatmul.f32.gmra.mxu0 %v442
        %v487 = vpop.f32.mrf.mxu0
        %v488 = vadd.f32 0.0, %v487
        %489 = vdwg.mxu0
        %v490 = vadd.f32 %v462, %v485
        %491 = vadd.xlane.f32.xlu0 %v490
        %v492 = vpop.xlane.xlu0 %491
        %v493 = vmul.f32 %v492, 0.00390625
        %v494 = vadd.f32 %v493, %v411
        %v495 = vmax.f32 %v494, 0.0
        %497 = vset.pattern.permute.xlu0 0
        %498 = vperm.xlu0 %497, %v412
        %v499 = vpop.permute.xlu0 %498
        %v501 = vadd.f32 %v465, %v499
        %v502 = vadd.f32 %v488, %v499
        %v503 = vmax.f32 %v501, 0.0
        %v504 = vmax.f32 %v502, 0.0
        %505 = vrot.lane.b32.xlu0 %v503, 68
        %v506 = vpop.permute.xlu0 %505
        %507 = vrot.lane.b32.xlu0 %v504, 68
        %v508 = vpop.permute.xlu0 %507
        %v509 = vlaneseq
        %v510 = vand.u32 %v509, 127
        %vm511 = vcmp.lt.s32.totalorder %v510, 68
        %v512 = vsel %vm511, %v506, %v508
        %v513 = vsel %vm511, %v508, %v506
        %v514 = vld [vmem:[%s10] ss:$8 sm:$0x3]
        %v516 = vperm.slane %v514, 0
        %v517 = vperm.slane %v514, 1
        %v520 = vmul.f32 %v513, %v516
        %v521 = vmul.f32 %v512, %v517
        %522 = vst [vmem:[#allocation2] sm:$0xff] %v520
        %523 = vst [vmem:[#allocation2 + $0x8] sm:$0xff] %v521
        %524 = vrot.lane.b32.xlu0 %v503, 64
        %v525 = vpop.permute.xlu0 %524
        %526 = vrot.lane.b32.xlu0 %v504, 64
        %v527 = vpop.permute.xlu0 %526
        %vm528 = vcmp.lt.s32.totalorder %v510, 64
        %v529 = vsel %vm528, %v525, %v527
        %v530 = vsel %vm528, %v527, %v525
        %s531 = scalar_lea.vmem %s10, 1
        %v532 = vld [vmem:[%s531] ss:$8 sm:$0x3]
        %v534 = vperm.slane %v532, 0
        %v535 = vperm.slane %v532, 1
        %v538 = vmul.f32 %v530, %v534
        %v539 = vmul.f32 %v529, %v535
        %540 = vst [vmem:[#allocation2 + $0x10] sm:$0xff] %v538
        %541 = vst [vmem:[#allocation2 + $0x18] sm:$0xff] %v539
        %542 = vrot.lane.b32.xlu0 %v503, 60
        %v543 = vpop.permute.xlu0 %542
        %544 = vrot.lane.b32.xlu0 %v504, 60
        %v545 = vpop.permute.xlu0 %544
        %vm546 = vcmp.lt.s32.totalorder %v510, 60
        %v547 = vsel %vm546, %v543, %v545
        %v548 = vsel %vm546, %v545, %v543
        %s549 = scalar_lea.vmem %s10, 2
        %v550 = vld [vmem:[%s549] ss:$8 sm:$0x3]
        %v552 = vperm.slane %v550, 0
        %v553 = vperm.slane %v550, 1
        %v556 = vmul.f32 %v548, %v552
        %v557 = vmul.f32 %v547, %v553
        %558 = vst [vmem:[#allocation2 + $0x20] sm:$0xff] %v556
        %559 = vst [vmem:[#allocation2 + $0x28] sm:$0xff] %v557
        %560 = vrot.lane.b32.xlu0 %v503, 4
        %v561 = vpop.permute.xlu0 %560
        %562 = vrot.lane.b32.xlu0 %v504, 4
        %v563 = vpop.permute.xlu0 %562
        %vm564 = vcmp.lt.s32.totalorder %v510, 4
        %v565 = vsel %vm564, %v561, %v563
        %v566 = vsel %vm564, %v563, %v561
        %s567 = scalar_lea.vmem %s10, 3
        %v568 = vld [vmem:[%s567] ss:$8 sm:$0x3]
        %v570 = vperm.slane %v568, 0
        %v571 = vperm.slane %v568, 1
        %v574 = vmul.f32 %v566, %v570
        %v575 = vmul.f32 %v565, %v571
        %576 = vst [vmem:[#allocation2 + $0x30] sm:$0xff] %v574
        %577 = vst [vmem:[#allocation2 + $0x38] sm:$0xff] %v575
        %578 = vst [vmem:[#allocation2 + $0x40] sm:$0xff] %v503
        %579 = vst [vmem:[#allocation2 + $0x48] sm:$0xff] %v504
        %580 = vrot.lane.b32.xlu0 %v503, 124
        %v581 = vpop.permute.xlu0 %580
        %582 = vrot.lane.b32.xlu0 %v504, 124
        %v583 = vpop.permute.xlu0 %582
        %vm584 = vcmp.lt.s32.totalorder %v510, 124
        %v585 = vsel %vm584, %v581, %v583
        %v586 = vsel %vm584, %v583, %v581
        %s587 = scalar_lea.vmem %s10, 5
        %v588 = vld [vmem:[%s587] ss:$8 sm:$0x3]
        %v590 = vperm.slane %v588, 0
        %v591 = vperm.slane %v588, 1
        %v594 = vmul.f32 %v585, %v590
        %v595 = vmul.f32 %v586, %v591
        %596 = vst [vmem:[#allocation2 + $0x50] sm:$0xff] %v594
        %597 = vst [vmem:[#allocation2 + $0x58] sm:$0xff] %v595
        %s598 = scalar_lea.vmem %s10, 6
        %v599 = vld [vmem:[%s598] ss:$8 sm:$0x3]
        %v601 = vperm.slane %v599, 0
        %v602 = vperm.slane %v599, 1
        %v605 = vmul.f32 %v512, %v601
        %v606 = vmul.f32 %v513, %v602
        %607 = vst [vmem:[#allocation2 + $0x60] sm:$0xff] %v605
        %608 = vst [vmem:[#allocation2 + $0x68] sm:$0xff] %v606
        %s609 = scalar_lea.vmem %s10, 7
        %v610 = vld [vmem:[%s609] ss:$8 sm:$0x3]
        %v612 = vperm.slane %v610, 0
        %v613 = vperm.slane %v610, 1
        %v616 = vmul.f32 %v529, %v612
        %v617 = vmul.f32 %v530, %v613
        %618 = vst [vmem:[#allocation2 + $0x70] sm:$0xff] %v616
        %619 = vst [vmem:[#allocation2 + $0x78] sm:$0xff] %v617
        %s620 = scalar_lea.vmem %s10, 16
        %v621 = vld [vmem:[%s620] ss:$8 sm:$0x3]
        %v623 = vperm.slane %v621, 0
        %v624 = vperm.slane %v621, 1
        %v627 = vmul.f32 %v547, %v623
        %v628 = vmul.f32 %v548, %v624
        %629 = vst [vmem:[#allocation2 + $0x80] sm:$0xff] %v627
        %630 = vst [vmem:[#allocation2 + $0x88] sm:$0xff] %v628
        %v631 = vld [vmem:[#allocation2] sm:$0xff]
        %v632 = vld [vmem:[#allocation2 + $0x8] sm:$0xff]
        %v633 = vld [vmem:[#allocation2 + $0x10] sm:$0xff]
        %v634 = vld [vmem:[#allocation2 + $0x18] sm:$0xff]
        %v635 = vld [vmem:[#allocation2 + $0x20] sm:$0xff]
        %v636 = vld [vmem:[#allocation2 + $0x28] sm:$0xff]
        %v637 = vld [vmem:[#allocation2 + $0x30] sm:$0xff]
        %v638 = vld [vmem:[#allocation2 + $0x38] sm:$0xff]
        %v639 = vld [vmem:[#allocation2 + $0x40] sm:$0xff]
        %v640 = vld [vmem:[#allocation2 + $0x48] sm:$0xff]
        %v641 = vld [vmem:[#allocation2 + $0x50] sm:$0xff]
        %v642 = vld [vmem:[#allocation2 + $0x58] sm:$0xff]
        %v643 = vld [vmem:[#allocation2 + $0x60] sm:$0xff]
        %v644 = vld [vmem:[#allocation2 + $0x68] sm:$0xff]
        %v645 = vld [vmem:[#allocation2 + $0x70] sm:$0xff]
        %v646 = vld [vmem:[#allocation2 + $0x78] sm:$0xff]
        %v647 = vld [vmem:[#allocation2 + $0x80] sm:$0xff]
        %v648 = vld [vmem:[#allocation2 + $0x88] sm:$0xff]
        %650 = vset.pattern.permute.xlu0 0
        %651 = vperm.xlu0 %650, %v424
        %v652 = vpop.permute.xlu0 %651
        %vm654 = vcmask 588800
        %v656 = vsel %vm654, %v421, 0
        %658 = vmatpush.msra.mxu0 0.0
        %659 = vmatpush.msra.mxu0 0.0
        %660 = vmatpush.msra.mxu0 0.0
        %661 = vmatpush.msra.mxu0 0.0
        %662 = vmatpush.msra.mxu0 0.0
        %663 = vmatpush.msra.mxu0 0.0
        %664 = vmatpush.msra.mxu0 0.0
        %665 = vmatpush.msra.mxu0 %v647
        %666 = vmatpush.msra.mxu0 %v645
        %667 = vmatpush.msra.mxu0 %v643
        %668 = vmatpush.msra.mxu0 %v641
        %669 = vmatpush.msra.mxu0 %v639
        %670 = vmatpush.msra.mxu0 %v637
        %671 = vmatpush.msra.mxu0 %v635
        %672 = vmatpush.msra.mxu0 %v633
        %673 = vmatpush.msra.mxu0 %v631
        %674 = vmatmul.f32.gmra.mxu0 %v656
        %v675 = vpop.f32.mrf.mxu0
        %v676 = vadd.f32 %v652, %v675
        %677 = vdwg.mxu0
        %678 = vmatpush.msra.mxu0 0.0
        %679 = vmatpush.msra.mxu0 0.0
        %680 = vmatpush.msra.mxu0 0.0
        %681 = vmatpush.msra.mxu0 0.0
        %682 = vmatpush.msra.mxu0 0.0
        %683 = vmatpush.msra.mxu0 0.0
        %684 = vmatpush.msra.mxu0 0.0
        %685 = vmatpush.msra.mxu0 %v648
        %686 = vmatpush.msra.mxu0 %v646
        %687 = vmatpush.msra.mxu0 %v644
        %688 = vmatpush.msra.mxu0 %v642
        %689 = vmatpush.msra.mxu0 %v640
        %690 = vmatpush.msra.mxu0 %v638
        %691 = vmatpush.msra.mxu0 %v636
        %692 = vmatpush.msra.mxu0 %v634
        %693 = vmatpush.msra.mxu0 %v632
        %694 = vmatmul.f32.gmra.mxu0 %v656
        %v695 = vpop.f32.mrf.mxu0
        %v696 = vadd.f32 %v652, %v695
        %697 = vdwg.mxu0
        %v698 = vmax.f32 %v676, 0.0
        %v699 = vmax.f32 %v696, 0.0
        %700 = vrot.lane.b32.xlu0 %v698, 68
        %v701 = vpop.permute.xlu0 %700
        %702 = vrot.lane.b32.xlu0 %v699, 68
        %v703 = vpop.permute.xlu0 %702
        %v704 = vsel %vm511, %v701, %v703
        %v705 = vsel %vm511, %v703, %v701
        %v706 = vld [vmem:[%s10] ss:$8 sm:$0x3]
        %v708 = vperm.slane %v706, 0
        %v709 = vperm.slane %v706, 1
        %v712 = vmul.f32 %v705, %v708
        %v713 = vmul.f32 %v704, %v709
        %714 = vst [vmem:[#allocation2] sm:$0xff] %v712
        %715 = vst [vmem:[#allocation2 + $0x8] sm:$0xff] %v713
        %716 = vrot.lane.b32.xlu0 %v698, 64
        %v717 = vpop.permute.xlu0 %716
        %718 = vrot.lane.b32.xlu0 %v699, 64
        %v719 = vpop.permute.xlu0 %718
        %v720 = vsel %vm528, %v717, %v719
        %v721 = vsel %vm528, %v719, %v717
        %v722 = vld [vmem:[%s531] ss:$8 sm:$0x3]
        %v724 = vperm.slane %v722, 0
        %v725 = vperm.slane %v722, 1
        %v728 = vmul.f32 %v721, %v724
        %v729 = vmul.f32 %v720, %v725
        %730 = vst [vmem:[#allocation2 + $0x10] sm:$0xff] %v728
        %731 = vst [vmem:[#allocation2 + $0x18] sm:$0xff] %v729
        %732 = vrot.lane.b32.xlu0 %v698, 60
        %v733 = vpop.permute.xlu0 %732
        %734 = vrot.lane.b32.xlu0 %v699, 60
        %v735 = vpop.permute.xlu0 %734
        %v736 = vsel %vm546, %v733, %v735
        %v737 = vsel %vm546, %v735, %v733
        %v738 = vld [vmem:[%s549] ss:$8 sm:$0x3]
        %v740 = vperm.slane %v738, 0
        %v741 = vperm.slane %v738, 1
        %v744 = vmul.f32 %v737, %v740
        %v745 = vmul.f32 %v736, %v741
        %746 = vst [vmem:[#allocation2 + $0x20] sm:$0xff] %v744
        %747 = vst [vmem:[#allocation2 + $0x28] sm:$0xff] %v745
        %748 = vrot.lane.b32.xlu0 %v698, 4
        %v749 = vpop.permute.xlu0 %748
        %750 = vrot.lane.b32.xlu0 %v699, 4
        %v751 = vpop.permute.xlu0 %750
        %v752 = vsel %vm564, %v749, %v751
        %v753 = vsel %vm564, %v751, %v749
        %v754 = vld [vmem:[%s567] ss:$8 sm:$0x3]
        %v756 = vperm.slane %v754, 0
        %v757 = vperm.slane %v754, 1
        %v760 = vmul.f32 %v753, %v756
        %v761 = vmul.f32 %v752, %v757
        %762 = vst [vmem:[#allocation2 + $0x30] sm:$0xff] %v760
        %763 = vst [vmem:[#allocation2 + $0x38] sm:$0xff] %v761
        %764 = vst [vmem:[#allocation2 + $0x40] sm:$0xff] %v698
        %765 = vst [vmem:[#allocation2 + $0x48] sm:$0xff] %v699
        %766 = vrot.lane.b32.xlu0 %v698, 124
        %v767 = vpop.permute.xlu0 %766
        %768 = vrot.lane.b32.xlu0 %v699, 124
        %v769 = vpop.permute.xlu0 %768
        %v770 = vsel %vm584, %v767, %v769
        %v771 = vsel %vm584, %v769, %v767
        %v772 = vld [vmem:[%s587] ss:$8 sm:$0x3]
        %v774 = vperm.slane %v772, 0
        %v775 = vperm.slane %v772, 1
        %v778 = vmul.f32 %v770, %v774
        %v779 = vmul.f32 %v771, %v775
        %780 = vst [vmem:[#allocation2 + $0x50] sm:$0xff] %v778
        %781 = vst [vmem:[#allocation2 + $0x58] sm:$0xff] %v779
        %v782 = vld [vmem:[%s598] ss:$8 sm:$0x3]
        %v784 = vperm.slane %v782, 0
        %v785 = vperm.slane %v782, 1
        %v788 = vmul.f32 %v704, %v784
        %v789 = vmul.f32 %v705, %v785
        %790 = vst [vmem:[#allocation2 + $0x60] sm:$0xff] %v788
        %791 = vst [vmem:[#allocation2 + $0x68] sm:$0xff] %v789
        %v792 = vld [vmem:[%s609] ss:$8 sm:$0x3]
        %v794 = vperm.slane %v792, 0
        %v795 = vperm.slane %v792, 1
        %v798 = vmul.f32 %v720, %v794
        %v799 = vmul.f32 %v721, %v795
        %800 = vst [vmem:[#allocation2 + $0x70] sm:$0xff] %v798
        %801 = vst [vmem:[#allocation2 + $0x78] sm:$0xff] %v799
        %v802 = vld [vmem:[%s620] ss:$8 sm:$0x3]
        %v804 = vperm.slane %v802, 0
        %v805 = vperm.slane %v802, 1
        %v808 = vmul.f32 %v736, %v804
        %v809 = vmul.f32 %v737, %v805
        %810 = vst [vmem:[#allocation2 + $0x80] sm:$0xff] %v808
        %811 = vst [vmem:[#allocation2 + $0x88] sm:$0xff] %v809
        %v812 = vld [vmem:[#allocation2] sm:$0xff]
        %v813 = vld [vmem:[#allocation2 + $0x8] sm:$0xff]
        %v814 = vld [vmem:[#allocation2 + $0x10] sm:$0xff]
        %v815 = vld [vmem:[#allocation2 + $0x18] sm:$0xff]
        %v816 = vld [vmem:[#allocation2 + $0x20] sm:$0xff]
        %v817 = vld [vmem:[#allocation2 + $0x28] sm:$0xff]
        %v818 = vld [vmem:[#allocation2 + $0x30] sm:$0xff]
        %v819 = vld [vmem:[#allocation2 + $0x38] sm:$0xff]
        %v820 = vld [vmem:[#allocation2 + $0x40] sm:$0xff]
        %v821 = vld [vmem:[#allocation2 + $0x48] sm:$0xff]
        %v822 = vld [vmem:[#allocation2 + $0x50] sm:$0xff]
        %v823 = vld [vmem:[#allocation2 + $0x58] sm:$0xff]
        %v824 = vld [vmem:[#allocation2 + $0x60] sm:$0xff]
        %v825 = vld [vmem:[#allocation2 + $0x68] sm:$0xff]
        %v826 = vld [vmem:[#allocation2 + $0x70] sm:$0xff]
        %v827 = vld [vmem:[#allocation2 + $0x78] sm:$0xff]
        %v828 = vld [vmem:[#allocation2 + $0x80] sm:$0xff]
        %v829 = vld [vmem:[#allocation2 + $0x88] sm:$0xff]
        %831 = vset.pattern.permute.xlu0 0
        %832 = vperm.xlu0 %831, %v426
        %v833 = vpop.permute.xlu0 %832
        %v836 = vsel %vm654, %v423, 0
        %838 = vmatpush.msra.mxu0 0.0
        %839 = vmatpush.msra.mxu0 0.0
        %840 = vmatpush.msra.mxu0 0.0
        %841 = vmatpush.msra.mxu0 0.0
        %842 = vmatpush.msra.mxu0 0.0
        %843 = vmatpush.msra.mxu0 0.0
        %844 = vmatpush.msra.mxu0 0.0
        %845 = vmatpush.msra.mxu0 %v828
        %846 = vmatpush.msra.mxu0 %v826
        %847 = vmatpush.msra.mxu0 %v824
        %848 = vmatpush.msra.mxu0 %v822
        %849 = vmatpush.msra.mxu0 %v820
        %850 = vmatpush.msra.mxu0 %v818
        %851 = vmatpush.msra.mxu0 %v816
        %852 = vmatpush.msra.mxu0 %v814
        %853 = vmatpush.msra.mxu0 %v812
        %854 = vmatmul.f32.gmra.mxu0 %v836
        %v855 = vpop.f32.mrf.mxu0
        %v856 = vadd.f32 %v833, %v855
        %857 = vdwg.mxu0
        %858 = vmatpush.msra.mxu0 0.0
        %859 = vmatpush.msra.mxu0 0.0
        %860 = vmatpush.msra.mxu0 0.0
        %861 = vmatpush.msra.mxu0 0.0
        %862 = vmatpush.msra.mxu0 0.0
        %863 = vmatpush.msra.mxu0 0.0
        %864 = vmatpush.msra.mxu0 0.0
        %865 = vmatpush.msra.mxu0 %v829
        %866 = vmatpush.msra.mxu0 %v827
        %867 = vmatpush.msra.mxu0 %v825
        %868 = vmatpush.msra.mxu0 %v823
        %869 = vmatpush.msra.mxu0 %v821
        %870 = vmatpush.msra.mxu0 %v819
        %871 = vmatpush.msra.mxu0 %v817
        %872 = vmatpush.msra.mxu0 %v815
        %873 = vmatpush.msra.mxu0 %v813
        %874 = vmatmul.f32.gmra.mxu0 %v836
        %v875 = vpop.f32.mrf.mxu0
        %v876 = vadd.f32 %v833, %v875
        %877 = vdwg.mxu0
        %v878 = vmax.f32 %v856, 0.0
        %v879 = vmax.f32 %v876, 0.0
        %881 = vset.pattern.permute.xlu0 0
        %882 = vperm.xlu0 %881, %v427
        %v883 = vpop.permute.xlu0 %882
        %v885 = vmul.f32 %v883, %v878
        %v886 = vmul.f32 %v883, %v879
        %v887 = vrot.slane %v885, 4
        %v888 = vadd.f32 %v885, %v887
        %v889 = vrot.slane %v888, 2
        %v890 = vadd.f32 %v888, %v889
        %v891 = vrot.slane %v890, 1
        %v892 = vadd.f32 %v890, %v891
        %v893 = vrot.slane %v886, 4
        %v894 = vadd.f32 %v886, %v893
        %v895 = vrot.slane %v894, 2
        %v896 = vadd.f32 %v894, %v895
        %v897 = vrot.slane %v896, 1
        %v898 = vadd.f32 %v896, %v897
        %900 = vset.pattern.permute.xlu0 0
        %901 = vperm.xlu0 %900, %v428
        %v902 = vpop.permute.xlu0 %901
        %v904 = vperm.slane %v902, 0
        %v905 = vadd.f32 %v892, %v904
        %v906 = vadd.f32 %v898, %v904
        %908 = vset.pattern.permute.xlu0 0
        %909 = vperm.xlu0 %908, %v495
        %v910 = vpop.permute.xlu0 %909
        %v912 = vmul.f32 %v910, %v905
        %v913 = vmul.f32 %v910, %v906
        %915 = vset.pattern.permute.xlu0 0
        %916 = vperm.xlu0 %915, %v417
        %v917 = vpop.permute.xlu0 %916
        %920 = vset.pattern.permute.xlu0 0
        %921 = vperm.xlu0 %920, %v418
        %v922 = vpop.permute.xlu0 %921
        %925 = vset.pattern.permute.xlu0 0
        %926 = vperm.xlu0 %925, %v419
        %v927 = vpop.permute.xlu0 %926
        %930 = vset.pattern.permute.xlu0 0
        %931 = vperm.xlu0 %930, %v420
        %v932 = vpop.permute.xlu0 %931
        %v934 = vmul.f32 %v917, %v905
        %v935 = vmul.f32 %v917, %v906
        %v936 = vmul.f32 %v922, %v905
        %v937 = vmul.f32 %v922, %v906
        %v938 = vmul.f32 %v927, %v905
        %v939 = vmul.f32 %v927, %v906
        %v940 = vmul.f32 %v932, %v905
        %v941 = vmul.f32 %v932, %v906
        %vm942 = vcmask 64512
        %v944 = vsel %vm942, %v413, 0
        %v947 = vsel %vm942, %v414, 0
        %v950 = vsel %vm942, %v415, 0
        %v953 = vsel %vm942, %v416, 0
        %955 = vmatpush.msra.mxu0 0.0
        %956 = vmatpush.msra.mxu0 0.0
        %957 = vmatpush.msra.mxu0 0.0
        %958 = vmatpush.msra.mxu0 0.0
        %959 = vmatpush.msra.mxu0 0.0
        %960 = vmatpush.msra.mxu0 0.0
        %961 = vmatpush.msra.mxu0 0.0
        %962 = vmatpush.msra.mxu0 0.0
        %963 = vmatpush.msra.mxu0 0.0
        %964 = vmatpush.msra.mxu0 0.0
        %965 = vmatpush.msra.mxu0 0.0
        %966 = vmatpush.msra.mxu0 0.0
        %967 = vmatpush.msra.mxu0 0.0
        %968 = vmatpush.msra.mxu0 0.0
        %969 = vmatpush.msra.mxu0 0.0
        %970 = vmatpush.msra.mxu0 %v912
        %971 = vmatmul.f32.gmra.mxu0 %v944
        %v972 = vpop.f32.mrf.mxu0
        %v973 = vadd.f32 %v934, %v972
        %974 = vmatmul.f32.gmra.mxu0 %v947
        %v975 = vpop.f32.mrf.mxu0
        %v976 = vadd.f32 %v936, %v975
        %977 = vmatmul.f32.gmra.mxu0 %v950
        %v978 = vpop.f32.mrf.mxu0
        %v979 = vadd.f32 %v938, %v978
        %980 = vmatmul.f32.gmra.mxu0 %v953
        %v981 = vpop.f32.mrf.mxu0
        %v982 = vadd.f32 %v940, %v981
        %983 = vdwg.mxu0
        %984 = vmatpush.msra.mxu0 0.0
        %985 = vmatpush.msra.mxu0 0.0
        %986 = vmatpush.msra.mxu0 0.0
        %987 = vmatpush.msra.mxu0 0.0
        %988 = vmatpush.msra.mxu0 0.0
        %989 = vmatpush.msra.mxu0 0.0
        %990 = vmatpush.msra.mxu0 0.0
        %991 = vmatpush.msra.mxu0 0.0
        %992 = vmatpush.msra.mxu0 0.0
        %993 = vmatpush.msra.mxu0 0.0
        %994 = vmatpush.msra.mxu0 0.0
        %995 = vmatpush.msra.mxu0 0.0
        %996 = vmatpush.msra.mxu0 0.0
        %997 = vmatpush.msra.mxu0 0.0
        %998 = vmatpush.msra.mxu0 0.0
        %999 = vmatpush.msra.mxu0 %v913
        %1000 = vmatmul.f32.gmra.mxu0 %v944
        %v1001 = vpop.f32.mrf.mxu0
        %v1002 = vadd.f32 %v935, %v1001
        %1003 = vmatmul.f32.gmra.mxu0 %v947
        %v1004 = vpop.f32.mrf.mxu0
        %v1005 = vadd.f32 %v937, %v1004
        %1006 = vmatmul.f32.gmra.mxu0 %v950
        %v1007 = vpop.f32.mrf.mxu0
        %v1008 = vadd.f32 %v939, %v1007
        %1009 = vmatmul.f32.gmra.mxu0 %v953
        %v1010 = vpop.f32.mrf.mxu0
        %v1011 = vadd.f32 %v941, %v1010
        %1012 = vdwg.mxu0
        %v1013 = vsub.f32 0.0, %v973
        %v1014 = vsub.f32 0.0, %v1002
        %v1015 = vsub.f32 0.0, %v976
        %v1016 = vsub.f32 0.0, %v1005
        %v1017 = vsub.f32 0.0, %v979
        %v1018 = vsub.f32 0.0, %v1008
        %v1019 = vsub.f32 0.0, %v982
        %v1020 = vsub.f32 0.0, %v1011
        %v1021 = vmul.f32 %v1013, 1.442695
        %v1022 = vpow.pop %v1021
        %v1023 = vmul.f32 %v1014, 1.442695
        %v1024 = vpow.pop %v1023
        %v1025 = vmul.f32 %v1015, 1.442695
        %v1026 = vpow.pop %v1025
        %v1027 = vmul.f32 %v1016, 1.442695
        %v1028 = vpow.pop %v1027
        %v1029 = vmul.f32 %v1017, 1.442695
        %v1030 = vpow.pop %v1029
        %v1031 = vmul.f32 %v1018, 1.442695
        %v1032 = vpow.pop %v1031
        %v1033 = vmul.f32 %v1019, 1.442695
        %v1034 = vpow.pop %v1033
        %v1035 = vmul.f32 %v1020, 1.442695
        %v1036 = vpow.pop %v1035
        %v1037 = vadd.f32 %v1022, 1.0
        %v1038 = vadd.f32 %v1024, 1.0
        %v1039 = vadd.f32 %v1026, 1.0
        %v1040 = vadd.f32 %v1028, 1.0
        %v1041 = vadd.f32 %v1030, 1.0
        %v1042 = vadd.f32 %v1032, 1.0
        %v1043 = vadd.f32 %v1034, 1.0
        %v1044 = vadd.f32 %v1036, 1.0
        %v1045 = vrcp.pop %v1037
        %v1046 = vmul.f32 %v1037, %v1045
        %v1047 = vsub.f32 1.0, %v1046
        %v1048 = vmul.f32 %v1045, %v1047
        %v1049 = vadd.f32 %v1045, %v1048
        %vm1050 = vweird.f32 %v1037
        %vm1051 = vweird.f32 %v1045
        %vm1052 = vmor %vm1050, %vm1051
        %v1053 = vsel %vm1052, %v1045, %v1049
        %v1054 = vand.u32 2147483647, %v1037
        %vm1055 = vcmp.eq.f32.partialorder %v1054, 8.507059e+37
        %v1056 = vand.u32 %v1037, 2147483648
        %v1057 = vor.u32 1.1754944e-38, %v1056
        %v1058 = vsel %vm1055, %v1057, %v1053
        %v1059 = vrcp.pop %v1038
        %v1060 = vmul.f32 %v1038, %v1059
        %v1061 = vsub.f32 1.0, %v1060
        %v1062 = vmul.f32 %v1059, %v1061
        %v1063 = vadd.f32 %v1059, %v1062
        %vm1064 = vweird.f32 %v1038
        %vm1065 = vweird.f32 %v1059
        %vm1066 = vmor %vm1064, %vm1065
        %v1067 = vsel %vm1066, %v1059, %v1063
        %v1068 = vand.u32 2147483647, %v1038
        %vm1069 = vcmp.eq.f32.partialorder %v1068, 8.507059e+37
        %v1070 = vand.u32 %v1038, 2147483648
        %v1071 = vor.u32 1.1754944e-38, %v1070
        %v1072 = vsel %vm1069, %v1071, %v1067
        %v1073 = vrcp.pop %v1039
        %v1074 = vmul.f32 %v1039, %v1073
        %v1075 = vsub.f32 1.0, %v1074
        %v1076 = vmul.f32 %v1073, %v1075
        %v1077 = vadd.f32 %v1073, %v1076
        %vm1078 = vweird.f32 %v1039
        %vm1079 = vweird.f32 %v1073
        %vm1080 = vmor %vm1078, %vm1079
        %v1081 = vsel %vm1080, %v1073, %v1077
        %v1082 = vand.u32 2147483647, %v1039
        %vm1083 = vcmp.eq.f32.partialorder %v1082, 8.507059e+37
        %v1084 = vand.u32 %v1039, 2147483648
        %v1085 = vor.u32 1.1754944e-38, %v1084
        %v1086 = vsel %vm1083, %v1085, %v1081
        %v1087 = vrcp.pop %v1040
        %v1088 = vmul.f32 %v1040, %v1087
        %v1089 = vsub.f32 1.0, %v1088
        %v1090 = vmul.f32 %v1087, %v1089
        %v1091 = vadd.f32 %v1087, %v1090
        %vm1092 = vweird.f32 %v1040
        %vm1093 = vweird.f32 %v1087
        %vm1094 = vmor %vm1092, %vm1093
        %v1095 = vsel %vm1094, %v1087, %v1091
        %v1096 = vand.u32 2147483647, %v1040
        %vm1097 = vcmp.eq.f32.partialorder %v1096, 8.507059e+37
        %v1098 = vand.u32 %v1040, 2147483648
        %v1099 = vor.u32 1.1754944e-38, %v1098
        %v1100 = vsel %vm1097, %v1099, %v1095
        %v1101 = vrcp.pop %v1041
        %v1102 = vmul.f32 %v1041, %v1101
        %v1103 = vsub.f32 1.0, %v1102
        %v1104 = vmul.f32 %v1101, %v1103
        %v1105 = vadd.f32 %v1101, %v1104
        %vm1106 = vweird.f32 %v1041
        %vm1107 = vweird.f32 %v1101
        %vm1108 = vmor %vm1106, %vm1107
        %v1109 = vsel %vm1108, %v1101, %v1105
        %v1110 = vand.u32 2147483647, %v1041
        %vm1111 = vcmp.eq.f32.partialorder %v1110, 8.507059e+37
        %v1112 = vand.u32 %v1041, 2147483648
        %v1113 = vor.u32 1.1754944e-38, %v1112
        %v1114 = vsel %vm1111, %v1113, %v1109
        %v1115 = vrcp.pop %v1042
        %v1116 = vmul.f32 %v1042, %v1115
        %v1117 = vsub.f32 1.0, %v1116
        %v1118 = vmul.f32 %v1115, %v1117
        %v1119 = vadd.f32 %v1115, %v1118
        %vm1120 = vweird.f32 %v1042
        %vm1121 = vweird.f32 %v1115
        %vm1122 = vmor %vm1120, %vm1121
        %v1123 = vsel %vm1122, %v1115, %v1119
        %v1124 = vand.u32 2147483647, %v1042
        %vm1125 = vcmp.eq.f32.partialorder %v1124, 8.507059e+37
        %v1126 = vand.u32 %v1042, 2147483648
        %v1127 = vor.u32 1.1754944e-38, %v1126
        %v1128 = vsel %vm1125, %v1127, %v1123
        %v1129 = vrcp.pop %v1043
        %v1130 = vmul.f32 %v1043, %v1129
        %v1131 = vsub.f32 1.0, %v1130
        %v1132 = vmul.f32 %v1129, %v1131
        %v1133 = vadd.f32 %v1129, %v1132
        %vm1134 = vweird.f32 %v1043
        %vm1135 = vweird.f32 %v1129
        %vm1136 = vmor %vm1134, %vm1135
        %v1137 = vsel %vm1136, %v1129, %v1133
        %v1138 = vand.u32 2147483647, %v1043
        %vm1139 = vcmp.eq.f32.partialorder %v1138, 8.507059e+37
        %v1140 = vand.u32 %v1043, 2147483648
        %v1141 = vor.u32 1.1754944e-38, %v1140
        %v1142 = vsel %vm1139, %v1141, %v1137
        %v1143 = vrcp.pop %v1044
        %v1144 = vmul.f32 %v1044, %v1143
        %v1145 = vsub.f32 1.0, %v1144
        %v1146 = vmul.f32 %v1143, %v1145
        %v1147 = vadd.f32 %v1143, %v1146
        %vm1148 = vweird.f32 %v1044
        %vm1149 = vweird.f32 %v1143
        %vm1150 = vmor %vm1148, %vm1149
        %v1151 = vsel %vm1150, %v1143, %v1147
        %v1152 = vand.u32 2147483647, %v1044
        %vm1153 = vcmp.eq.f32.partialorder %v1152, 8.507059e+37
        %v1154 = vand.u32 %v1044, 2147483648
        %v1155 = vor.u32 1.1754944e-38, %v1154
        %v1156 = vsel %vm1153, %v1155, %v1151
        %v1157 = vadd.f32 %v1058, 1.0
        %v1158 = vadd.f32 %v1072, 1.0
        %v1159 = vadd.f32 %v1086, 1.0
        %v1160 = vadd.f32 %v1100, 1.0
        %v1161 = vadd.f32 %v1114, 1.0
        %v1162 = vadd.f32 %v1128, 1.0
        %v1163 = vadd.f32 %v1142, 1.0
        %v1164 = vadd.f32 %v1156, 1.0
        %v1165 = vmul.f32 %v1157, %v429
        %v1166 = vmul.f32 %v1158, %v430
        %v1167 = vmul.f32 %v1159, %v431
        %v1168 = vmul.f32 %v1160, %v432
        %v1169 = vmul.f32 %v1161, %v433
        %v1170 = vmul.f32 %v1162, %v434
        %v1171 = vmul.f32 %v1163, %v435
        %v1172 = vmul.f32 %v1164, %v436
        %1173 = vst [vmem:[%s408] sm:$0xff] %v1165
        %1174 = vst [vmem:[%s408 + $0x8] sm:$0xff] %v1166
        %1175 = vst [vmem:[%s408 + $0x10] sm:$0xff] %v1167
        %1176 = vst [vmem:[%s408 + $0x18] sm:$0xff] %v1168
        %1177 = vst [vmem:[%s408 + $0x20] sm:$0xff] %v1169
        %1178 = vst [vmem:[%s408 + $0x28] sm:$0xff] %v1170
        %1179 = vst [vmem:[%s408 + $0x30] sm:$0xff] %v1171
        %1180 = vst [vmem:[%s408 + $0x38] sm:$0xff] %v1172
        %s1181 = sand.u32 %s274, 1
        %s1182 = scalar_lea.sflag [#allocation6], %s1181
        %s1183 = sand.u32 %s274, 1
        %s1184 = smul.addr %s1183, 64
        %s1185 = scalar_lea.vmem [#allocation7], %s1184
        // Predicated region
        $region69: #{tpu_custom_call.1} parent=63 // pred_check
          %p1186 = pneg %p284
        $region70: #{tpu_custom_call.1} parent=63 // pred_check_branch
          %1188 = sbr.rel (%p1186) target = $region72
        $region71: #{tpu_custom_call.1} parent=63 // pred_region
          %1190 = vsyncadd %s1182, 0
          %s1191 = smul.addr %s30, 8
          %s1192 = smul.addr %s1191, 8
          %s1193 = scalar_lea.hbm %s11, %s1192
          %s1194 = sshll.u32 %s1185, 4
          %s1195 = int_to_ptr.vmem [resolvable:$true] %s1194
          %s1196 = sshll.u32 %s1193, 4
          %s1197 = int_to_ptr.hbm [resolvable:$true] %s1196
          %1202 = dma.vmem_to_hbm [thread:$0]  %s1195, 1024, %s1197, %s1182, 256, 256, 16
        $region72: #{tpu_custom_call.1} parent=63 // pred_fallthru
          _
      $region64: #{tpu_custom_call.1} parent=5 // pred_fallthru
        _
      %p1203 = scmp.le.s32.totalorder 2, %s25
      // Predicated region
      $region73: #{tpu_custom_call.1} parent=5 // pred_check
        %p1204 = pneg %p1203
      $region74: #{tpu_custom_call.1} parent=5 // pred_check_branch
        %1206 = sbr.rel (%p1204) target = $region76
      $region75: #{tpu_custom_call.1} parent=5 // pred_region
        %s1207 = ssub.s32 %s25, 2
        // Predicated region
        $region77: #{tpu_custom_call.1} parent=75 // pred_check
          %p1208 = pneg %p290
        $region78: #{tpu_custom_call.1} parent=75 // pred_check_branch
          %1210 = sbr.rel (%p1208) target = $region80
        $region79: #{tpu_custom_call.1} parent=75 // pred_region
          %s1211 = sand.u32 %s275, 1
          %s1212 = scalar_lea.sflag [#allocation6], %s1211
          %s1213 = sand.u32 %s275, 1
          %s1214 = smul.addr %s1213, 64
          %s1215 = scalar_lea.vmem [#allocation7], %s1214
          %1217 = dma.done %s1212, 1024
        $region80: #{tpu_custom_call.1} parent=75 // pred_fallthru
          _
      $region76: #{tpu_custom_call.1} parent=5 // pred_fallthru
        _
    $region6: #{tpu_custom_call.1} parent=1 // loop_footer
      %s29 = sadd.s32 1, %s25
    $region7: #{tpu_custom_call.1} parent=1 // loop_footer_branch
      %24 = sbr.rel target = $region3
    $region8: #{tpu_custom_call.1} parent=1 // loop_exit
      _
    %1218 = vsyncpa [#allocation5], 1
    %s1219 = scalar_lea.sflag [#allocation5], 1
    %1220 = vsyncpa %s1219, 1
    %1221 = vsyncpa [#allocation6], 1
    %s1222 = scalar_lea.sflag [#allocation6], 1
    %1223 = vsyncpa %s1222, 1

</llo_original>
